<compile_context>
chip_gen: v7x
topology: tpu7x:2x2x1
jax: 0.10.0
libtpu: 0.0.40
codegen_flags: <defaults>
</compile_context>

<pallas_src>
import jax
import jax.numpy as jnp
from jax.experimental import pallas as pl
from jax.experimental.pallas import tpu as pltpu

INPUT_SIZE = 1036
H1, H2, H3 = 512, 256, 128
OUTPUT_SIZE = 32

K_PAD = 1152    # fc1 contraction dim padded to a multiple of 128 (9 * 128)
OUT_PAD = 128   # output lane width padded to 128 (lane-dense stores)
MAX_TILE_B = 256


def _round_up(n, m):
    return (n + m - 1) // m * m


def _pick_tile_b(B):
    """Largest MXU-friendly batch tile (multiple of 8, capped at 256 rows)."""
    Bp = _round_up(max(B, 1), 8)
    return min(MAX_TILE_B, Bp)


def dara_mlp_kernel(x_ref, w1_ref, b1_ref, w2_ref, b2_ref,
                    w3_ref, b3_ref, w4_ref, b4_ref, o_ref):
    # fc1 + ReLU  (bf16 operands, f32 MXU accumulation, f32 bias)
    h = jnp.dot(x_ref[...], w1_ref[...], preferred_element_type=jnp.float32)
    h = jnp.maximum(h + b1_ref[...], 0.0).astype(jnp.bfloat16)
    # fc2 + ReLU  (dropout == identity in eval mode)
    h = jnp.dot(h, w2_ref[...], preferred_element_type=jnp.float32)
    h = jnp.maximum(h + b2_ref[...], 0.0).astype(jnp.bfloat16)
    # fc3 + ReLU  (dropout == identity in eval mode)
    h = jnp.dot(h, w3_ref[...], preferred_element_type=jnp.float32)
    h = jnp.maximum(h + b3_ref[...], 0.0).astype(jnp.bfloat16)
    # fc4 (no activation); bias already zero-padded to OUT_PAD lanes
    h = jnp.dot(h, w4_ref[...], preferred_element_type=jnp.float32)
    o_ref[...] = (h + b4_ref[...]).astype(o_ref.dtype)


def dara_classifier_forward(x, params, *, tile_b=None):
    """x: (B, INPUT_SIZE) f32. Returns (B, OUTPUT_SIZE) f32."""
    w1, b1, w2, b2, w3, b3, w4, b4 = params
    B = x.shape[0]
    if tile_b is None:
        tile_b = _pick_tile_b(B)
    B_pad = _round_up(B, tile_b)

    # ---- wrapper-side layout prep (zero padding is exact: pads add 0 to dots)
    xp = jnp.pad(x.astype(jnp.bfloat16),
                 ((0, B_pad - B), (0, K_PAD - INPUT_SIZE)))
    w1p = jnp.pad(w1.astype(jnp.bfloat16), ((0, K_PAD - INPUT_SIZE), (0, 0)))
    w2b = w2.astype(jnp.bfloat16)
    w3b = w3.astype(jnp.bfloat16)
    w4p = jnp.pad(w4.astype(jnp.bfloat16), ((0, 0), (0, OUT_PAD - OUTPUT_SIZE)))
    b4p = jnp.pad(b4, ((0, 0), (0, OUT_PAD - OUTPUT_SIZE)))

    grid = (B_pad // tile_b,)

    def full(shape):
        # Constant block index -> weight/bias stays resident in VMEM.
        return pl.BlockSpec(shape, lambda i: (0, 0))

    flops = 2 * B_pad * (K_PAD * H1 + H1 * H2 + H2 * H3 + H3 * OUT_PAD)
    bytes_accessed = (
        xp.size * 2 + w1p.size * 2 + w2b.size * 2 + w3b.size * 2 + w4p.size * 2
        + (b1.size + b2.size + b3.size + b4p.size) * 4
        + B_pad * OUT_PAD * 4)

    out = pl.pallas_call(
        dara_mlp_kernel,
        out_shape=jax.ShapeDtypeStruct((B_pad, OUT_PAD), jnp.float32),
        grid_spec=pltpu.PrefetchScalarGridSpec(
            num_scalar_prefetch=0,
            grid=grid,
            in_specs=[
                pl.BlockSpec((tile_b, K_PAD), lambda i: (i, 0)),   # x tile
                full((K_PAD, H1)), full((1, H1)),
                full((H1, H2)), full((1, H2)),
                full((H2, H3)), full((1, H3)),
                full((H3, OUT_PAD)), full((1, OUT_PAD)),
            ],
            out_specs=pl.BlockSpec((tile_b, OUT_PAD), lambda i: (i, 0)),
        ),
        compiler_params=pltpu.CompilerParams(
            dimension_semantics=("parallel",)),
        cost_estimate=pl.CostEstimate(
            flops=flops, transcendentals=0, bytes_accessed=bytes_accessed),
    )(xp, w1p, b1, w2b, b2, w3b, b3, w4p, b4p)

    # x.view(-1, output_size): drop batch padding and padded output lanes.
    return out[:B, :OUTPUT_SIZE]


def init_params(key):
    """Deterministic parameter init, shapes matching the torch module."""
    ks = jax.random.split(key, 8)

    def linear(kw, kb, fan_in, fan_out):
        bound = 1.0 / (fan_in ** 0.5)
        w = jax.random.uniform(kw, (fan_in, fan_out), jnp.float32, -bound, bound)
        b = jax.random.uniform(kb, (1, fan_out), jnp.float32, -bound, bound)
        return w, b

    w1, b1 = linear(ks[0], ks[1], INPUT_SIZE, H1)
    w2, b2 = linear(ks[2], ks[3], H1, H2)
    w3, b3 = linear(ks[4], ks[5], H2, H3)
    w4, b4 = linear(ks[6], ks[7], H3, OUTPUT_SIZE)
    return (w1, b1, w2, b2, w3, b3, w4, b4)


def reference_forward(x, params):
    """f32 reference with the same bf16 input/weight quantization as the kernel."""
    w1, b1, w2, b2, w3, b3, w4, b4 = params
    q = lambda a: a.astype(jnp.bfloat16).astype(jnp.float32)
    h = jnp.maximum(q(x) @ q(w1) + b1, 0.0)
    h = jnp.maximum(q(h) @ q(w2) + b2, 0.0)
    h = jnp.maximum(q(h) @ q(w3) + b3, 0.0)
    return (q(h) @ q(w4) + b4).reshape(-1, OUTPUT_SIZE)


if __name__ == "__main__":
    key = jax.random.PRNGKey(0)
    k_x, k_p = jax.random.split(key)

    # Small batch (feature dims are fixed by the module: 1036 -> ... -> 32).
    B = 16
    x = jax.random.normal(k_x, (B, INPUT_SIZE), dtype=jnp.float32)
    params = init_params(k_p)

    out = dara_classifier_forward(x, params)
    out = jax.block_until_ready(out)

    ref = reference_forward(x, params)
    assert out.shape == (B, OUTPUT_SIZE)
    max_err = float(jnp.max(jnp.abs(out - ref)))
    assert jnp.allclose(out, ref, atol=2e-3, rtol=2e-3), (
        f"mismatch vs reference (max abs err {max_err})")

    # Also exercise the multi-tile / batch-padding path (grid > 1, 256-row tiles).
    B2 = 600
    x2 = jax.random.normal(k_x, (B2, INPUT_SIZE), dtype=jnp.float32)
    out2 = jax.block_until_ready(dara_classifier_forward(x2, params))
    ref2 = reference_forward(x2, params)
    assert out2.shape == (B2, OUTPUT_SIZE)
    assert jnp.allclose(out2, ref2, atol=2e-3, rtol=2e-3)

    print("KERNEL_OK")
</pallas_src>

<mosaic_0001>
module attributes {stable_mosaic.version = 11 : i64} {
  func.func @dara_mlp_kernel(%arg0: i32, %arg1: memref<16x1152xbf16, #tpu.memory_space<vmem>>, %arg2: memref<1152x512xbf16, #tpu.memory_space<vmem>>, %arg3: memref<1x512xf32, #tpu.memory_space<vmem>>, %arg4: memref<512x256xbf16, #tpu.memory_space<vmem>>, %arg5: memref<1x256xf32, #tpu.memory_space<vmem>>, %arg6: memref<256x128xbf16, #tpu.memory_space<vmem>>, %arg7: memref<1x128xf32, #tpu.memory_space<vmem>>, %arg8: memref<128x128xbf16, #tpu.memory_space<vmem>>, %arg9: memref<1x128xf32, #tpu.memory_space<vmem>>, %arg10: memref<16x128xf32, #tpu.memory_space<vmem>>) attributes {dimension_semantics = [#tpu.dimension_semantics<parallel>], iteration_bounds = array<i64: 1>, scalar_prefetch = 0 : i64, scratch_operands = 0 : i64, tpu.core_type = #tpu.core_type<tc>, window_params = [{transform_indices = @transform_0, window_bounds = array<i64: 16, 1152>}, {pipeline_mode = #tpu.pipeline_mode<synchronous>, transform_indices = @transform_1, window_bounds = array<i64: 1152, 512>}, {pipeline_mode = #tpu.pipeline_mode<synchronous>, transform_indices = @transform_2, window_bounds = array<i64: 1, 512>}, {pipeline_mode = #tpu.pipeline_mode<synchronous>, transform_indices = @transform_3, window_bounds = array<i64: 512, 256>}, {pipeline_mode = #tpu.pipeline_mode<synchronous>, transform_indices = @transform_4, window_bounds = array<i64: 1, 256>}, {pipeline_mode = #tpu.pipeline_mode<synchronous>, transform_indices = @transform_5, window_bounds = array<i64: 256, 128>}, {pipeline_mode = #tpu.pipeline_mode<synchronous>, transform_indices = @transform_6, window_bounds = array<i64: 1, 128>}, {pipeline_mode = #tpu.pipeline_mode<synchronous>, transform_indices = @transform_7, window_bounds = array<i64: 128, 128>}, {pipeline_mode = #tpu.pipeline_mode<synchronous>, transform_indices = @transform_8, window_bounds = array<i64: 1, 128>}, {transform_indices = @transform_9, window_bounds = array<i64: 16, 128>}]} {
    %c0 = arith.constant 0 : index
    %c0_0 = arith.constant 0 : index
    %0 = vector.load %arg1[%c0, %c0_0] : memref<16x1152xbf16, #tpu.memory_space<vmem>>, vector<16x1152xbf16>
    %c0_1 = arith.constant 0 : index
    %c0_2 = arith.constant 0 : index
    %1 = vector.load %arg2[%c0_1, %c0_2] : memref<1152x512xbf16, #tpu.memory_space<vmem>>, vector<1152x512xbf16>
    %cst = arith.constant dense<0.000000e+00> : vector<16x512xf32>
    %2 = tpu.matmul %0, %1, %cst {dimension_numbers = #tpu.dot_dimension_numbers<[1], [0], [0], [1], [0, 0, 1, 1], [], []>} : vector<16x1152xbf16>, vector<1152x512xbf16>, vector<16x512xf32> -> vector<16x512xf32>
    %c0_3 = arith.constant 0 : index
    %c0_4 = arith.constant 0 : index
    %3 = vector.load %arg3[%c0_3, %c0_4] : memref<1x512xf32, #tpu.memory_space<vmem>>, vector<1x512xf32>
    %4 = vector.broadcast %3 : vector<1x512xf32> to vector<16x512xf32>
    %5 = arith.addf %2, %4 : vector<16x512xf32>
    %cst_5 = arith.constant 0.000000e+00 : f32
    %6 = vector.broadcast %cst_5 : f32 to vector<16x512xf32>
    %7 = arith.maximumf %5, %6 : vector<16x512xf32>
    %8 = arith.truncf %7 : vector<16x512xf32> to vector<16x512xbf16>
    %c0_6 = arith.constant 0 : index
    %c0_7 = arith.constant 0 : index
    %9 = vector.load %arg4[%c0_6, %c0_7] : memref<512x256xbf16, #tpu.memory_space<vmem>>, vector<512x256xbf16>
    %cst_8 = arith.constant dense<0.000000e+00> : vector<16x256xf32>
    %10 = tpu.matmul %8, %9, %cst_8 {dimension_numbers = #tpu.dot_dimension_numbers<[1], [0], [0], [1], [0, 0, 1, 1], [], []>} : vector<16x512xbf16>, vector<512x256xbf16>, vector<16x256xf32> -> vector<16x256xf32>
    %c0_9 = arith.constant 0 : index
    %c0_10 = arith.constant 0 : index
    %11 = vector.load %arg5[%c0_9, %c0_10] : memref<1x256xf32, #tpu.memory_space<vmem>>, vector<1x256xf32>
    %12 = vector.broadcast %11 : vector<1x256xf32> to vector<16x256xf32>
    %13 = arith.addf %10, %12 : vector<16x256xf32>
    %cst_11 = arith.constant 0.000000e+00 : f32
    %14 = vector.broadcast %cst_11 : f32 to vector<16x256xf32>
    %15 = arith.maximumf %13, %14 : vector<16x256xf32>
    %16 = arith.truncf %15 : vector<16x256xf32> to vector<16x256xbf16>
    %c0_12 = arith.constant 0 : index
    %c0_13 = arith.constant 0 : index
    %17 = vector.load %arg6[%c0_12, %c0_13] : memref<256x128xbf16, #tpu.memory_space<vmem>>, vector<256x128xbf16>
    %cst_14 = arith.constant dense<0.000000e+00> : vector<16x128xf32>
    %18 = tpu.matmul %16, %17, %cst_14 {dimension_numbers = #tpu.dot_dimension_numbers<[1], [0], [0], [1], [0, 0, 1, 1], [], []>} : vector<16x256xbf16>, vector<256x128xbf16>, vector<16x128xf32> -> vector<16x128xf32>
    %c0_15 = arith.constant 0 : index
    %c0_16 = arith.constant 0 : index
    %19 = vector.load %arg7[%c0_15, %c0_16] : memref<1x128xf32, #tpu.memory_space<vmem>>, vector<1x128xf32>
    %20 = vector.broadcast %19 : vector<1x128xf32> to vector<16x128xf32>
    %21 = arith.addf %18, %20 : vector<16x128xf32>
    %cst_17 = arith.constant 0.000000e+00 : f32
    %22 = vector.broadcast %cst_17 : f32 to vector<16x128xf32>
    %23 = arith.maximumf %21, %22 : vector<16x128xf32>
    %24 = arith.truncf %23 : vector<16x128xf32> to vector<16x128xbf16>
    %c0_18 = arith.constant 0 : index
    %c0_19 = arith.constant 0 : index
    %25 = vector.load %arg8[%c0_18, %c0_19] : memref<128x128xbf16, #tpu.memory_space<vmem>>, vector<128x128xbf16>
    %cst_20 = arith.constant dense<0.000000e+00> : vector<16x128xf32>
    %26 = tpu.matmul %24, %25, %cst_20 {dimension_numbers = #tpu.dot_dimension_numbers<[1], [0], [0], [1], [0, 0, 1, 1], [], []>} : vector<16x128xbf16>, vector<128x128xbf16>, vector<16x128xf32> -> vector<16x128xf32>
    %c0_21 = arith.constant 0 : index
    %c0_22 = arith.constant 0 : index
    %27 = vector.load %arg9[%c0_21, %c0_22] : memref<1x128xf32, #tpu.memory_space<vmem>>, vector<1x128xf32>
    %28 = vector.broadcast %27 : vector<1x128xf32> to vector<16x128xf32>
    %29 = arith.addf %26, %28 : vector<16x128xf32>
    %c0_23 = arith.constant 0 : index
    %c0_24 = arith.constant 0 : index
    %30 = vector.load %arg10[%c0_23, %c0_24] : memref<16x128xf32, #tpu.memory_space<vmem>>, vector<16x128xf32>
    tpu.vector_store %arg10[%c0_23, %c0_24], %29 {strides = array<i32>} : memref<16x128xf32, #tpu.memory_space<vmem>>, vector<16x128xf32>,
    return
  }
  func.func @transform_0(%arg0: i32) -> (i32, i32) {
    %c0_i32 = arith.constant 0 : i32
    %c0_i32_0 = arith.constant 0 : i32
    return %arg0, %c0_i32 : i32, i32
  }
  func.func @transform_1(%arg0: i32) -> (i32, i32) {
    %c0_i32 = arith.constant 0 : i32
    %c0_i32_0 = arith.constant 0 : i32
    %c0_i32_1 = arith.constant 0 : i32
    return %c0_i32, %c0_i32_0 : i32, i32
  }
  func.func @transform_2(%arg0: i32) -> (i32, i32) {
    %c0_i32 = arith.constant 0 : i32
    %c0_i32_0 = arith.constant 0 : i32
    %c0_i32_1 = arith.constant 0 : i32
    return %c0_i32, %c0_i32_0 : i32, i32
  }
  func.func @transform_3(%arg0: i32) -> (i32, i32) {
    %c0_i32 = arith.constant 0 : i32
    %c0_i32_0 = arith.constant 0 : i32
    %c0_i32_1 = arith.constant 0 : i32
    return %c0_i32, %c0_i32_0 : i32, i32
  }
  func.func @transform_4(%arg0: i32) -> (i32, i32) {
    %c0_i32 = arith.constant 0 : i32
    %c0_i32_0 = arith.constant 0 : i32
    %c0_i32_1 = arith.constant 0 : i32
    return %c0_i32, %c0_i32_0 : i32, i32
  }
  func.func @transform_5(%arg0: i32) -> (i32, i32) {
    %c0_i32 = arith.constant 0 : i32
    %c0_i32_0 = arith.constant 0 : i32
    %c0_i32_1 = arith.constant 0 : i32
    return %c0_i32, %c0_i32_0 : i32, i32
  }
  func.func @transform_6(%arg0: i32) -> (i32, i32) {
    %c0_i32 = arith.constant 0 : i32
    %c0_i32_0 = arith.constant 0 : i32
    %c0_i32_1 = arith.constant 0 : i32
    return %c0_i32, %c0_i32_0 : i32, i32
  }
  func.func @transform_7(%arg0: i32) -> (i32, i32) {
    %c0_i32 = arith.constant 0 : i32
    %c0_i32_0 = arith.constant 0 : i32
    %c0_i32_1 = arith.constant 0 : i32
    return %c0_i32, %c0_i32_0 : i32, i32
  }
  func.func @transform_8(%arg0: i32) -> (i32, i32) {
    %c0_i32 = arith.constant 0 : i32
    %c0_i32_0 = arith.constant 0 : i32
    %c0_i32_1 = arith.constant 0 : i32
    return %c0_i32, %c0_i32_0 : i32, i32
  }
  func.func @transform_9(%arg0: i32) -> (i32, i32) {
    %c0_i32 = arith.constant 0 : i32
    %c0_i32_0 = arith.constant 0 : i32
    return %arg0, %c0_i32 : i32, i32
  }
}

</mosaic_0001>

<llo_original>
// kernel: tpu_custom_call.1
$region0: #{tpu_custom_call.1}
  #allocation0 [shape = 'u32[]', space=smem, size = 0x4, offset = 0x4, fixed_abs, tag = 'smem constant byte address 0x4 - core index']
  #allocation1 [shape = 'u32[144,128]{1,0:T(1,128)}', space=vmem, size = 0x12000, scoped, tag = 'internal scratch']
  %s0 = inlined_call_operand.hbm [shape: bf16[16,1152], index: 0, kind: input, shape index: {}]
  %s1 = inlined_call_operand.hbm [shape: bf16[1152,512], index: 1, kind: input, shape index: {}]
  %s2 = inlined_call_operand.hbm [shape: f32[1,512], index: 2, kind: input, shape index: {}]
  %s3 = inlined_call_operand.hbm [shape: bf16[512,256], index: 3, kind: input, shape index: {}]
  %s4 = inlined_call_operand.hbm [shape: f32[1,256], index: 4, kind: input, shape index: {}]
  %s5 = inlined_call_operand.hbm [shape: bf16[256,128], index: 5, kind: input, shape index: {}]
  %s6 = inlined_call_operand.hbm [shape: f32[1,128], index: 6, kind: input, shape index: {}]
  %s7 = inlined_call_operand.hbm [shape: bf16[128,128], index: 7, kind: input, shape index: {}]
  %s8 = inlined_call_operand.hbm [shape: f32[1,128], index: 8, kind: input, shape index: {}]
  %s9 = inlined_call_operand.hbm [shape: f32[16,128], index: 9, kind: output, shape index: {}]
  %s10 = sld [smem:[#allocation0]]
  $region82: #{tpu_custom_call.1} parent=0
    _
  %s12 = ssub.s32 1, %s10
  %s13 = scalar_select 0, %s12, %s10
  $region1: #{tpu_custom_call.1} parent=0
    #allocation2 [shape = 'u8[36864]{0}', space=vmem, size = 0x9000, scoped, tag = 'input window, operand 0, single buffered']
    #allocation3 [shape = 's32[1]{0}', space=sflag, size = 0x4, scoped, tag = 'scoped memory for tpu_custom_call.1']
    #allocation4 [shape = 's32[1]{0}', space=sflag, size = 0x4, scoped, tag = 'scoped memory for tpu_custom_call.1']
    #allocation5 [shape = 'u8[1179648]{0}', space=vmem, size = 0x120000, scoped, tag = 'input window, operand 1, single buffered']
    #allocation6 [shape = 's32[1]{0}', space=sflag, size = 0x4, scoped, tag = 'scoped memory for tpu_custom_call.1']
    #allocation7 [shape = 'u8[2048]{0}', space=vmem, size = 0x800, scoped, tag = 'input window, operand 2, single buffered']
    #allocation8 [shape = 'u8[262144]{0}', space=vmem, size = 0x40000, scoped, tag = 'input window, operand 3, single buffered']
    #allocation9 [shape = 's32[1]{0}', space=sflag, size = 0x4, scoped, tag = 'scoped memory for tpu_custom_call.1']
    #allocation10 [shape = 'u8[1024]{0}', space=vmem, size = 0x400, scoped, tag = 'input window, operand 4, single buffered']
    #allocation11 [shape = 'u8[65536]{0}', space=vmem, size = 0x10000, scoped, tag = 'input window, operand 5, single buffered']
    #allocation12 [shape = 's32[1]{0}', space=sflag, size = 0x4, scoped, tag = 'scoped memory for tpu_custom_call.1']
    #allocation13 [shape = 'u8[512]{0}', space=vmem, size = 0x400, scoped, tag = 'input window, operand 6, single buffered']
    #allocation14 [shape = 'u8[32768]{0}', space=vmem, size = 0x8000, scoped, tag = 'input window, operand 7, single buffered']
    #allocation15 [shape = 's32[1]{0}', space=sflag, size = 0x4, scoped, tag = 'scoped memory for tpu_custom_call.1']
    #allocation16 [shape = 'u8[512]{0}', space=vmem, size = 0x400, scoped, tag = 'input window, operand 8, single buffered']
    #allocation17 [shape = 'u8[8192]{0}', space=vmem, size = 0x2000, scoped, tag = 'output window, operand 0, single buffered']
    %14 = vsyncpa [#allocation3], 0
    %15 = vsyncpa [#allocation6], 0
    %16 = vsyncpa [#allocation9], 0
    %17 = vsyncpa [#allocation12], 0
    %18 = vsyncpa [#allocation15], 0
    %19 = vsyncpa [#allocation4], 0
    // Predicated region
    $region2: #{tpu_custom_call.1} parent=1 // pred_check
      _
    $region3: #{tpu_custom_call.1} parent=1 // pred_check_branch
      %21 = sbr.rel (0) target = $region5
    $region4: #{tpu_custom_call.1} parent=1 // pred_region
      %s23 = ssub.s32 1152, 1152
      %24 = vsyncadd [#allocation3], %s23
      %s25 = sshll.u32 [#allocation2], 4
      %s26 = int_to_ptr.vmem [resolvable:$true] %s25
      %31 = dma.hbm_to_vmem [thread:$0]  %s0, 1152, %s26, [#allocation3], 576, 576, 36
    $region5: #{tpu_custom_call.1} parent=1 // pred_fallthru
      _
    // Predicated region
    $region6: #{tpu_custom_call.1} parent=1 // pred_check
      _
    $region7: #{tpu_custom_call.1} parent=1 // pred_check_branch
      %33 = sbr.rel (0) target = $region9
    $region8: #{tpu_custom_call.1} parent=1 // pred_region
      %s35 = ssub.s32 36864, 36864
      %36 = vsyncadd [#allocation6], %s35
      %s37 = sshll.u32 [#allocation5], 4
      %s38 = int_to_ptr.vmem [resolvable:$true] %s37
      %43 = dma.hbm_to_vmem [thread:$0]  %s1, 36864, %s38, [#allocation6], 256, 256, 16
    $region9: #{tpu_custom_call.1} parent=1 // pred_fallthru
      _
    // Predicated region
    $region10: #{tpu_custom_call.1} parent=1 // pred_check
      _
    $region11: #{tpu_custom_call.1} parent=1 // pred_check_branch
      %45 = sbr.rel (0) target = $region13
    $region12: #{tpu_custom_call.1} parent=1 // pred_region
      %s47 = ssub.s32 64, 64
      %48 = vsyncadd [#allocation6], %s47
      %s50 = sshll.u32 [#allocation7], 4
      %s51 = int_to_ptr.vmem [resolvable:$true] %s50
      %53 = dma.hbm_to_vmem [thread:$0]  %s2, 64, %s51, [#allocation6]
    $region13: #{tpu_custom_call.1} parent=1 // pred_fallthru
      _
    // Predicated region
    $region14: #{tpu_custom_call.1} parent=1 // pred_check
      _
    $region15: #{tpu_custom_call.1} parent=1 // pred_check_branch
      %55 = sbr.rel (0) target = $region17
    $region16: #{tpu_custom_call.1} parent=1 // pred_region
      %s57 = ssub.s32 8192, 8192
      %58 = vsyncadd [#allocation9], %s57
      %s59 = sshll.u32 [#allocation8], 4
      %s60 = int_to_ptr.vmem [resolvable:$true] %s59
      %65 = dma.hbm_to_vmem [thread:$0]  %s3, 8192, %s60, [#allocation9], 128, 128, 8
    $region17: #{tpu_custom_call.1} parent=1 // pred_fallthru
      _
    // Predicated region
    $region18: #{tpu_custom_call.1} parent=1 // pred_check
      _
    $region19: #{tpu_custom_call.1} parent=1 // pred_check_branch
      %67 = sbr.rel (0) target = $region21
    $region20: #{tpu_custom_call.1} parent=1 // pred_region
      %s69 = ssub.s32 32, 32
      %70 = vsyncadd [#allocation9], %s69
      %s72 = sshll.u32 [#allocation10], 4
      %s73 = int_to_ptr.vmem [resolvable:$true] %s72
      %75 = dma.hbm_to_vmem [thread:$0]  %s4, 32, %s73, [#allocation9]
    $region21: #{tpu_custom_call.1} parent=1 // pred_fallthru
      _
    // Predicated region
    $region22: #{tpu_custom_call.1} parent=1 // pred_check
      _
    $region23: #{tpu_custom_call.1} parent=1 // pred_check_branch
      %77 = sbr.rel (0) target = $region25
    $region24: #{tpu_custom_call.1} parent=1 // pred_region
      %s79 = ssub.s32 2048, 2048
      %80 = vsyncadd [#allocation12], %s79
      %s81 = sshll.u32 [#allocation11], 4
      %s82 = int_to_ptr.vmem [resolvable:$true] %s81
      %87 = dma.hbm_to_vmem [thread:$0]  %s5, 2048, %s82, [#allocation12], 64, 64, 4
    $region25: #{tpu_custom_call.1} parent=1 // pred_fallthru
      _
    // Predicated region
    $region26: #{tpu_custom_call.1} parent=1 // pred_check
      _
    $region27: #{tpu_custom_call.1} parent=1 // pred_check_branch
      %89 = sbr.rel (0) target = $region29
    $region28: #{tpu_custom_call.1} parent=1 // pred_region
      %s91 = ssub.s32 16, 16
      %92 = vsyncadd [#allocation12], %s91
      %s94 = sshll.u32 [#allocation13], 4
      %s95 = int_to_ptr.vmem [resolvable:$true] %s94
      %97 = dma.hbm_to_vmem [thread:$0]  %s6, 16, %s95, [#allocation12]
    $region29: #{tpu_custom_call.1} parent=1 // pred_fallthru
      _
    // Predicated region
    $region30: #{tpu_custom_call.1} parent=1 // pred_check
      _
    $region31: #{tpu_custom_call.1} parent=1 // pred_check_branch
      %99 = sbr.rel (0) target = $region33
    $region32: #{tpu_custom_call.1} parent=1 // pred_region
      %s101 = ssub.s32 1024, 1024
      %102 = vsyncadd [#allocation15], %s101
      %s103 = sshll.u32 [#allocation14], 4
      %s104 = int_to_ptr.vmem [resolvable:$true] %s103
      %109 = dma.hbm_to_vmem [thread:$0]  %s7, 1024, %s104, [#allocation15], 64, 64, 4
    $region33: #{tpu_custom_call.1} parent=1 // pred_fallthru
      _
    // Predicated region
    $region34: #{tpu_custom_call.1} parent=1 // pred_check
      _
    $region35: #{tpu_custom_call.1} parent=1 // pred_check_branch
      %111 = sbr.rel (0) target = $region37
    $region36: #{tpu_custom_call.1} parent=1 // pred_region
      %s113 = ssub.s32 16, 16
      %114 = vsyncadd [#allocation15], %s113
      %s116 = sshll.u32 [#allocation16], 4
      %s117 = int_to_ptr.vmem [resolvable:$true] %s116
      %119 = dma.hbm_to_vmem [thread:$0]  %s8, 16, %s117, [#allocation15]
    $region37: #{tpu_custom_call.1} parent=1 // pred_fallthru
      _
    // Predicated region
    $region38: #{tpu_custom_call.1} parent=1 // pred_check
      _
    $region39: #{tpu_custom_call.1} parent=1 // pred_check_branch
      %121 = sbr.rel (0) target = $region41
    $region40: #{tpu_custom_call.1} parent=1 // pred_region
      %122 = dma.done [#allocation3], 1152
    $region41: #{tpu_custom_call.1} parent=1 // pred_fallthru
      _
    // Predicated region
    $region42: #{tpu_custom_call.1} parent=1 // pred_check
      _
    $region43: #{tpu_custom_call.1} parent=1 // pred_check_branch
      %124 = sbr.rel (0) target = $region45
    $region44: #{tpu_custom_call.1} parent=1 // pred_region
      %125 = dma.done [#allocation6], 36864
    $region45: #{tpu_custom_call.1} parent=1 // pred_fallthru
      _
    // Predicated region
    $region46: #{tpu_custom_call.1} parent=1 // pred_check
      _
    $region47: #{tpu_custom_call.1} parent=1 // pred_check_branch
      %127 = sbr.rel (0) target = $region49
    $region48: #{tpu_custom_call.1} parent=1 // pred_region
      %128 = dma.done [#allocation6], 64
    $region49: #{tpu_custom_call.1} parent=1 // pred_fallthru
      _
    // Predicated region
    $region50: #{tpu_custom_call.1} parent=1 // pred_check
      _
    $region51: #{tpu_custom_call.1} parent=1 // pred_check_branch
      %130 = sbr.rel (0) target = $region53
    $region52: #{tpu_custom_call.1} parent=1 // pred_region
      %131 = dma.done [#allocation9], 8192
    $region53: #{tpu_custom_call.1} parent=1 // pred_fallthru
      _
    // Predicated region
    $region54: #{tpu_custom_call.1} parent=1 // pred_check
      _
    $region55: #{tpu_custom_call.1} parent=1 // pred_check_branch
      %133 = sbr.rel (0) target = $region57
    $region56: #{tpu_custom_call.1} parent=1 // pred_region
      %134 = dma.done [#allocation9], 32
    $region57: #{tpu_custom_call.1} parent=1 // pred_fallthru
      _
    // Predicated region
    $region58: #{tpu_custom_call.1} parent=1 // pred_check
      _
    $region59: #{tpu_custom_call.1} parent=1 // pred_check_branch
      %136 = sbr.rel (0) target = $region61
    $region60: #{tpu_custom_call.1} parent=1 // pred_region
      %137 = dma.done [#allocation12], 2048
    $region61: #{tpu_custom_call.1} parent=1 // pred_fallthru
      _
    // Predicated region
    $region62: #{tpu_custom_call.1} parent=1 // pred_check
      _
    $region63: #{tpu_custom_call.1} parent=1 // pred_check_branch
      %139 = sbr.rel (0) target = $region65
    $region64: #{tpu_custom_call.1} parent=1 // pred_region
      %140 = dma.done [#allocation12], 16
    $region65: #{tpu_custom_call.1} parent=1 // pred_fallthru
      _
    // Predicated region
    $region66: #{tpu_custom_call.1} parent=1 // pred_check
      _
    $region67: #{tpu_custom_call.1} parent=1 // pred_check_branch
      %142 = sbr.rel (0) target = $region69
    $region68: #{tpu_custom_call.1} parent=1 // pred_region
      %143 = dma.done [#allocation15], 1024
    $region69: #{tpu_custom_call.1} parent=1 // pred_fallthru
      _
    // Predicated region
    $region70: #{tpu_custom_call.1} parent=1 // pred_check
      _
    $region71: #{tpu_custom_call.1} parent=1 // pred_check_branch
      %145 = sbr.rel (0) target = $region73
    $region72: #{tpu_custom_call.1} parent=1 // pred_region
      %146 = dma.done [#allocation15], 16
    $region73: #{tpu_custom_call.1} parent=1 // pred_fallthru
      _
    %v148 = vld [vmem:[#allocation2] sm:$0xff]
    %v149 = vld [vmem:[#allocation2 + $0x8] sm:$0xff]
    %v150 = vld [vmem:[#allocation2 + $0x10] sm:$0xff]
    %v151 = vld [vmem:[#allocation2 + $0x18] sm:$0xff]
    %v152 = vld [vmem:[#allocation2 + $0x20] sm:$0xf]
    %v153 = vld [vmem:[#allocation2 + $0x24] sm:$0xff]
    %v154 = vld [vmem:[#allocation2 + $0x2c] sm:$0xff]
    %v155 = vld [vmem:[#allocation2 + $0x34] sm:$0xff]
    %v156 = vld [vmem:[#allocation2 + $0x3c] sm:$0xff]
    %v157 = vld [vmem:[#allocation2 + $0x44] sm:$0xf]
    %v158 = vld [vmem:[#allocation5] sm:$0xff]
    %v159 = vld [vmem:[#allocation5 + $0x8] sm:$0xff]
    %v160 = vld [vmem:[#allocation5 + $0x10] sm:$0xff]
    %v161 = vld [vmem:[#allocation5 + $0x18] sm:$0xff]
    %v162 = vld [vmem:[#allocation5 + $0x20] sm:$0xff]
    %v163 = vld [vmem:[#allocation5 + $0x28] sm:$0xff]
    %v164 = vld [vmem:[#allocation5 + $0x30] sm:$0xff]
    %v165 = vld [vmem:[#allocation5 + $0x38] sm:$0xff]
    %v166 = vld [vmem:[#allocation5 + $0x40] sm:$0xff]
    %v167 = vld [vmem:[#allocation5 + $0x48] sm:$0xff]
    %v168 = vld [vmem:[#allocation5 + $0x50] sm:$0xff]
    %v169 = vld [vmem:[#allocation5 + $0x58] sm:$0xff]
    %v170 = vld [vmem:[#allocation5 + $0x60] sm:$0xff]
    %v171 = vld [vmem:[#allocation5 + $0x68] sm:$0xff]
    %v172 = vld [vmem:[#allocation5 + $0x70] sm:$0xff]
    %v173 = vld [vmem:[#allocation5 + $0x78] sm:$0xff]
    %v174 = vld [vmem:[#allocation5 + $0x80] sm:$0xff]
    %v175 = vld [vmem:[#allocation5 + $0x88] sm:$0xff]
    %v176 = vld [vmem:[#allocation5 + $0x90] sm:$0xff]
    %v177 = vld [vmem:[#allocation5 + $0x98] sm:$0xff]
    %v178 = vld [vmem:[#allocation5 + $0xa0] sm:$0xff]
    %v179 = vld [vmem:[#allocation5 + $0xa8] sm:$0xff]
    %v180 = vld [vmem:[#allocation5 + $0xb0] sm:$0xff]
    %v181 = vld [vmem:[#allocation5 + $0xb8] sm:$0xff]
    %v182 = vld [vmem:[#allocation5 + $0xc0] sm:$0xff]
    %v183 = vld [vmem:[#allocation5 + $0xc8] sm:$0xff]
    %v184 = vld [vmem:[#allocation5 + $0xd0] sm:$0xff]
    %v185 = vld [vmem:[#allocation5 + $0xd8] sm:$0xff]
    %v186 = vld [vmem:[#allocation5 + $0xe0] sm:$0xff]
    %v187 = vld [vmem:[#allocation5 + $0xe8] sm:$0xff]
    %v188 = vld [vmem:[#allocation5 + $0xf0] sm:$0xff]
    %v189 = vld [vmem:[#allocation5 + $0xf8] sm:$0xff]
    %v190 = vld [vmem:[#allocation5 + $0x100] sm:$0xff]
    %v191 = vld [vmem:[#allocation5 + $0x108] sm:$0xff]
    %v192 = vld [vmem:[#allocation5 + $0x110] sm:$0xff]
    %v193 = vld [vmem:[#allocation5 + $0x118] sm:$0xff]
    %v194 = vld [vmem:[#allocation5 + $0x120] sm:$0xff]
    %v195 = vld [vmem:[#allocation5 + $0x128] sm:$0xff]
    %v196 = vld [vmem:[#allocation5 + $0x130] sm:$0xff]
    %v197 = vld [vmem:[#allocation5 + $0x138] sm:$0xff]
    %v198 = vld [vmem:[#allocation5 + $0x140] sm:$0xff]
    %v199 = vld [vmem:[#allocation5 + $0x148] sm:$0xff]
    %v200 = vld [vmem:[#allocation5 + $0x150] sm:$0xff]
    %v201 = vld [vmem:[#allocation5 + $0x158] sm:$0xff]
    %v202 = vld [vmem:[#allocation5 + $0x160] sm:$0xff]
    %v203 = vld [vmem:[#allocation5 + $0x168] sm:$0xff]
    %v204 = vld [vmem:[#allocation5 + $0x170] sm:$0xff]
    %v205 = vld [vmem:[#allocation5 + $0x178] sm:$0xff]
    %v206 = vld [vmem:[#allocation5 + $0x180] sm:$0xff]
    %v207 = vld [vmem:[#allocation5 + $0x188] sm:$0xff]
    %v208 = vld [vmem:[#allocation5 + $0x190] sm:$0xff]
    %v209 = vld [vmem:[#allocation5 + $0x198] sm:$0xff]
    %v210 = vld [vmem:[#allocation5 + $0x1a0] sm:$0xff]
    %v211 = vld [vmem:[#allocation5 + $0x1a8] sm:$0xff]
    %v212 = vld [vmem:[#allocation5 + $0x1b0] sm:$0xff]
    %v213 = vld [vmem:[#allocation5 + $0x1b8] sm:$0xff]
    %v214 = vld [vmem:[#allocation5 + $0x1c0] sm:$0xff]
    %v215 = vld [vmem:[#allocation5 + $0x1c8] sm:$0xff]
    %v216 = vld [vmem:[#allocation5 + $0x1d0] sm:$0xff]
    %v217 = vld [vmem:[#allocation5 + $0x1d8] sm:$0xff]
    %v218 = vld [vmem:[#allocation5 + $0x1e0] sm:$0xff]
    %v219 = vld [vmem:[#allocation5 + $0x1e8] sm:$0xff]
    %v220 = vld [vmem:[#allocation5 + $0x1f0] sm:$0xff]
    %v221 = vld [vmem:[#allocation5 + $0x1f8] sm:$0xff]
    %v222 = vld [vmem:[#allocation5 + $0x200] sm:$0xff]
    %v223 = vld [vmem:[#allocation5 + $0x208] sm:$0xff]
    %v224 = vld [vmem:[#allocation5 + $0x210] sm:$0xff]
    %v225 = vld [vmem:[#allocation5 + $0x218] sm:$0xff]
    %v226 = vld [vmem:[#allocation5 + $0x220] sm:$0xff]
    %v227 = vld [vmem:[#allocation5 + $0x228] sm:$0xff]
    %v228 = vld [vmem:[#allocation5 + $0x230] sm:$0xff]
    %v229 = vld [vmem:[#allocation5 + $0x238] sm:$0xff]
    %v230 = vld [vmem:[#allocation5 + $0x240] sm:$0xff]
    %v231 = vld [vmem:[#allocation5 + $0x248] sm:$0xff]
    %v232 = vld [vmem:[#allocation5 + $0x250] sm:$0xff]
    %v233 = vld [vmem:[#allocation5 + $0x258] sm:$0xff]
    %v234 = vld [vmem:[#allocation5 + $0x260] sm:$0xff]
    %v235 = vld [vmem:[#allocation5 + $0x268] sm:$0xff]
    %v236 = vld [vmem:[#allocation5 + $0x270] sm:$0xff]
    %v237 = vld [vmem:[#allocation5 + $0x278] sm:$0xff]
    %v238 = vld [vmem:[#allocation5 + $0x280] sm:$0xff]
    %v239 = vld [vmem:[#allocation5 + $0x288] sm:$0xff]
    %v240 = vld [vmem:[#allocation5 + $0x290] sm:$0xff]
    %v241 = vld [vmem:[#allocation5 + $0x298] sm:$0xff]
    %v242 = vld [vmem:[#allocation5 + $0x2a0] sm:$0xff]
    %v243 = vld [vmem:[#allocation5 + $0x2a8] sm:$0xff]
    %v244 = vld [vmem:[#allocation5 + $0x2b0] sm:$0xff]
    %v245 = vld [vmem:[#allocation5 + $0x2b8] sm:$0xff]
    %v246 = vld [vmem:[#allocation5 + $0x2c0] sm:$0xff]
    %v247 = vld [vmem:[#allocation5 + $0x2c8] sm:$0xff]
    %v248 = vld [vmem:[#allocation5 + $0x2d0] sm:$0xff]
    %v249 = vld [vmem:[#allocation5 + $0x2d8] sm:$0xff]
    %v250 = vld [vmem:[#allocation5 + $0x2e0] sm:$0xff]
    %v251 = vld [vmem:[#allocation5 + $0x2e8] sm:$0xff]
    %v252 = vld [vmem:[#allocation5 + $0x2f0] sm:$0xff]
    %v253 = vld [vmem:[#allocation5 + $0x2f8] sm:$0xff]
    %v254 = vld [vmem:[#allocation5 + $0x300] sm:$0xff]
    %v255 = vld [vmem:[#allocation5 + $0x308] sm:$0xff]
    %v256 = vld [vmem:[#allocation5 + $0x310] sm:$0xff]
    %v257 = vld [vmem:[#allocation5 + $0x318] sm:$0xff]
    %v258 = vld [vmem:[#allocation5 + $0x320] sm:$0xff]
    %v259 = vld [vmem:[#allocation5 + $0x328] sm:$0xff]
    %v260 = vld [vmem:[#allocation5 + $0x330] sm:$0xff]
    %v261 = vld [vmem:[#allocation5 + $0x338] sm:$0xff]
    %v262 = vld [vmem:[#allocation5 + $0x340] sm:$0xff]
    %v263 = vld [vmem:[#allocation5 + $0x348] sm:$0xff]
    %v264 = vld [vmem:[#allocation5 + $0x350] sm:$0xff]
    %v265 = vld [vmem:[#allocation5 + $0x358] sm:$0xff]
    %v266 = vld [vmem:[#allocation5 + $0x360] sm:$0xff]
    %v267 = vld [vmem:[#allocation5 + $0x368] sm:$0xff]
    %v268 = vld [vmem:[#allocation5 + $0x370] sm:$0xff]
    %v269 = vld [vmem:[#allocation5 + $0x378] sm:$0xff]
    %v270 = vld [vmem:[#allocation5 + $0x380] sm:$0xff]
    %v271 = vld [vmem:[#allocation5 + $0x388] sm:$0xff]
    %v272 = vld [vmem:[#allocation5 + $0x390] sm:$0xff]
    %v273 = vld [vmem:[#allocation5 + $0x398] sm:$0xff]
    %v274 = vld [vmem:[#allocation5 + $0x3a0] sm:$0xff]
    %v275 = vld [vmem:[#allocation5 + $0x3a8] sm:$0xff]
    %v276 = vld [vmem:[#allocation5 + $0x3b0] sm:$0xff]
    %v277 = vld [vmem:[#allocation5 + $0x3b8] sm:$0xff]
    %v278 = vld [vmem:[#allocation5 + $0x3c0] sm:$0xff]
    %v279 = vld [vmem:[#allocation5 + $0x3c8] sm:$0xff]
    %v280 = vld [vmem:[#allocation5 + $0x3d0] sm:$0xff]
    %v281 = vld [vmem:[#allocation5 + $0x3d8] sm:$0xff]
    %v282 = vld [vmem:[#allocation5 + $0x3e0] sm:$0xff]
    %v283 = vld [vmem:[#allocation5 + $0x3e8] sm:$0xff]
    %v284 = vld [vmem:[#allocation5 + $0x3f0] sm:$0xff]
    %v285 = vld [vmem:[#allocation5 + $0x3f8] sm:$0xff]
    %v286 = vld [vmem:[#allocation5 + $0x400] sm:$0xff]
    %v287 = vld [vmem:[#allocation5 + $0x408] sm:$0xff]
    %v288 = vld [vmem:[#allocation5 + $0x410] sm:$0xff]
    %v289 = vld [vmem:[#allocation5 + $0x418] sm:$0xff]
    %v290 = vld [vmem:[#allocation5 + $0x420] sm:$0xff]
    %v291 = vld [vmem:[#allocation5 + $0x428] sm:$0xff]
    %v292 = vld [vmem:[#allocation5 + $0x430] sm:$0xff]
    %v293 = vld [vmem:[#allocation5 + $0x438] sm:$0xff]
    %v294 = vld [vmem:[#allocation5 + $0x440] sm:$0xff]
    %v295 = vld [vmem:[#allocation5 + $0x448] sm:$0xff]
    %v296 = vld [vmem:[#allocation5 + $0x450] sm:$0xff]
    %v297 = vld [vmem:[#allocation5 + $0x458] sm:$0xff]
    %v298 = vld [vmem:[#allocation5 + $0x460] sm:$0xff]
    %v299 = vld [vmem:[#allocation5 + $0x468] sm:$0xff]
    %v300 = vld [vmem:[#allocation5 + $0x470] sm:$0xff]
    %v301 = vld [vmem:[#allocation5 + $0x478] sm:$0xff]
    %v302 = vld [vmem:[#allocation5 + $0x480] sm:$0xff]
    %v303 = vld [vmem:[#allocation5 + $0x488] sm:$0xff]
    %v304 = vld [vmem:[#allocation5 + $0x490] sm:$0xff]
    %v305 = vld [vmem:[#allocation5 + $0x498] sm:$0xff]
    %v306 = vld [vmem:[#allocation5 + $0x4a0] sm:$0xff]
    %v307 = vld [vmem:[#allocation5 + $0x4a8] sm:$0xff]
    %v308 = vld [vmem:[#allocation5 + $0x4b0] sm:$0xff]
    %v309 = vld [vmem:[#allocation5 + $0x4b8] sm:$0xff]
    %v310 = vld [vmem:[#allocation5 + $0x4c0] sm:$0xff]
    %v311 = vld [vmem:[#allocation5 + $0x4c8] sm:$0xff]
    %v312 = vld [vmem:[#allocation5 + $0x4d0] sm:$0xff]
    %v313 = vld [vmem:[#allocation5 + $0x4d8] sm:$0xff]
    %v314 = vld [vmem:[#allocation5 + $0x4e0] sm:$0xff]
    %v315 = vld [vmem:[#allocation5 + $0x4e8] sm:$0xff]
    %v316 = vld [vmem:[#allocation5 + $0x4f0] sm:$0xff]
    %v317 = vld [vmem:[#allocation5 + $0x4f8] sm:$0xff]
    %v318 = vld [vmem:[#allocation5 + $0x500] sm:$0xff]
    %v319 = vld [vmem:[#allocation5 + $0x508] sm:$0xff]
    %v320 = vld [vmem:[#allocation5 + $0x510] sm:$0xff]
    %v321 = vld [vmem:[#allocation5 + $0x518] sm:$0xff]
    %v322 = vld [vmem:[#allocation5 + $0x520] sm:$0xff]
    %v323 = vld [vmem:[#allocation5 + $0x528] sm:$0xff]
    %v324 = vld [vmem:[#allocation5 + $0x530] sm:$0xff]
    %v325 = vld [vmem:[#allocation5 + $0x538] sm:$0xff]
    %v326 = vld [vmem:[#allocation5 + $0x540] sm:$0xff]
    %v327 = vld [vmem:[#allocation5 + $0x548] sm:$0xff]
    %v328 = vld [vmem:[#allocation5 + $0x550] sm:$0xff]
    %v329 = vld [vmem:[#allocation5 + $0x558] sm:$0xff]
    %v330 = vld [vmem:[#allocation5 + $0x560] sm:$0xff]
    %v331 = vld [vmem:[#allocation5 + $0x568] sm:$0xff]
    %v332 = vld [vmem:[#allocation5 + $0x570] sm:$0xff]
    %v333 = vld [vmem:[#allocation5 + $0x578] sm:$0xff]
    %v334 = vld [vmem:[#allocation5 + $0x580] sm:$0xff]
    %v335 = vld [vmem:[#allocation5 + $0x588] sm:$0xff]
    %v336 = vld [vmem:[#allocation5 + $0x590] sm:$0xff]
    %v337 = vld [vmem:[#allocation5 + $0x598] sm:$0xff]
    %v338 = vld [vmem:[#allocation5 + $0x5a0] sm:$0xff]
    %v339 = vld [vmem:[#allocation5 + $0x5a8] sm:$0xff]
    %v340 = vld [vmem:[#allocation5 + $0x5b0] sm:$0xff]
    %v341 = vld [vmem:[#allocation5 + $0x5b8] sm:$0xff]
    %v342 = vld [vmem:[#allocation5 + $0x5c0] sm:$0xff]
    %v343 = vld [vmem:[#allocation5 + $0x5c8] sm:$0xff]
    %v344 = vld [vmem:[#allocation5 + $0x5d0] sm:$0xff]
    %v345 = vld [vmem:[#allocation5 + $0x5d8] sm:$0xff]
    %v346 = vld [vmem:[#allocation5 + $0x5e0] sm:$0xff]
    %v347 = vld [vmem:[#allocation5 + $0x5e8] sm:$0xff]
    %v348 = vld [vmem:[#allocation5 + $0x5f0] sm:$0xff]
    %v349 = vld [vmem:[#allocation5 + $0x5f8] sm:$0xff]
    %v350 = vld [vmem:[#allocation5 + $0x600] sm:$0xff]
    %v351 = vld [vmem:[#allocation5 + $0x608] sm:$0xff]
    %v352 = vld [vmem:[#allocation5 + $0x610] sm:$0xff]
    %v353 = vld [vmem:[#allocation5 + $0x618] sm:$0xff]
    %v354 = vld [vmem:[#allocation5 + $0x620] sm:$0xff]
    %v355 = vld [vmem:[#allocation5 + $0x628] sm:$0xff]
    %v356 = vld [vmem:[#allocation5 + $0x630] sm:$0xff]
    %v357 = vld [vmem:[#allocation5 + $0x638] sm:$0xff]
    %v358 = vld [vmem:[#allocation5 + $0x640] sm:$0xff]
    %v359 = vld [vmem:[#allocation5 + $0x648] sm:$0xff]
    %v360 = vld [vmem:[#allocation5 + $0x650] sm:$0xff]
    %v361 = vld [vmem:[#allocation5 + $0x658] sm:$0xff]
    %v362 = vld [vmem:[#allocation5 + $0x660] sm:$0xff]
    %v363 = vld [vmem:[#allocation5 + $0x668] sm:$0xff]
    %v364 = vld [vmem:[#allocation5 + $0x670] sm:$0xff]
    %v365 = vld [vmem:[#allocation5 + $0x678] sm:$0xff]
    %v366 = vld [vmem:[#allocation5 + $0x680] sm:$0xff]
    %v367 = vld [vmem:[#allocation5 + $0x688] sm:$0xff]
    %v368 = vld [vmem:[#allocation5 + $0x690] sm:$0xff]
    %v369 = vld [vmem:[#allocation5 + $0x698] sm:$0xff]
    %v370 = vld [vmem:[#allocation5 + $0x6a0] sm:$0xff]
    %v371 = vld [vmem:[#allocation5 + $0x6a8] sm:$0xff]
    %v372 = vld [vmem:[#allocation5 + $0x6b0] sm:$0xff]
    %v373 = vld [vmem:[#allocation5 + $0x6b8] sm:$0xff]
    %v374 = vld [vmem:[#allocation5 + $0x6c0] sm:$0xff]
    %v375 = vld [vmem:[#allocation5 + $0x6c8] sm:$0xff]
    %v376 = vld [vmem:[#allocation5 + $0x6d0] sm:$0xff]
    %v377 = vld [vmem:[#allocation5 + $0x6d8] sm:$0xff]
    %v378 = vld [vmem:[#allocation5 + $0x6e0] sm:$0xff]
    %v379 = vld [vmem:[#allocation5 + $0x6e8] sm:$0xff]
    %v380 = vld [vmem:[#allocation5 + $0x6f0] sm:$0xff]
    %v381 = vld [vmem:[#allocation5 + $0x6f8] sm:$0xff]
    %v382 = vld [vmem:[#allocation5 + $0x700] sm:$0xff]
    %v383 = vld [vmem:[#allocation5 + $0x708] sm:$0xff]
    %v384 = vld [vmem:[#allocation5 + $0x710] sm:$0xff]
    %v385 = vld [vmem:[#allocation5 + $0x718] sm:$0xff]
    %v386 = vld [vmem:[#allocation5 + $0x720] sm:$0xff]
    %v387 = vld [vmem:[#allocation5 + $0x728] sm:$0xff]
    %v388 = vld [vmem:[#allocation5 + $0x730] sm:$0xff]
    %v389 = vld [vmem:[#allocation5 + $0x738] sm:$0xff]
    %v390 = vld [vmem:[#allocation5 + $0x740] sm:$0xff]
    %v391 = vld [vmem:[#allocation5 + $0x748] sm:$0xff]
    %v392 = vld [vmem:[#allocation5 + $0x750] sm:$0xff]
    %v393 = vld [vmem:[#allocation5 + $0x758] sm:$0xff]
    %v394 = vld [vmem:[#allocation5 + $0x760] sm:$0xff]
    %v395 = vld [vmem:[#allocation5 + $0x768] sm:$0xff]
    %v396 = vld [vmem:[#allocation5 + $0x770] sm:$0xff]
    %v397 = vld [vmem:[#allocation5 + $0x778] sm:$0xff]
    %v398 = vld [vmem:[#allocation5 + $0x780] sm:$0xff]
    %v399 = vld [vmem:[#allocation5 + $0x788] sm:$0xff]
    %v400 = vld [vmem:[#allocation5 + $0x790] sm:$0xff]
    %v401 = vld [vmem:[#allocation5 + $0x798] sm:$0xff]
    %v402 = vld [vmem:[#allocation5 + $0x7a0] sm:$0xff]
    %v403 = vld [vmem:[#allocation5 + $0x7a8] sm:$0xff]
    %v404 = vld [vmem:[#allocation5 + $0x7b0] sm:$0xff]
    %v405 = vld [vmem:[#allocation5 + $0x7b8] sm:$0xff]
    %v406 = vld [vmem:[#allocation5 + $0x7c0] sm:$0xff]
    %v407 = vld [vmem:[#allocation5 + $0x7c8] sm:$0xff]
    %v408 = vld [vmem:[#allocation5 + $0x7d0] sm:$0xff]
    %v409 = vld [vmem:[#allocation5 + $0x7d8] sm:$0xff]
    %v410 = vld [vmem:[#allocation5 + $0x7e0] sm:$0xff]
    %v411 = vld [vmem:[#allocation5 + $0x7e8] sm:$0xff]
    %v412 = vld [vmem:[#allocation5 + $0x7f0] sm:$0xff]
    %v413 = vld [vmem:[#allocation5 + $0x7f8] sm:$0xff]
    %v414 = vld [vmem:[#allocation5 + $0x800] sm:$0xff]
    %v415 = vld [vmem:[#allocation5 + $0x808] sm:$0xff]
    %v416 = vld [vmem:[#allocation5 + $0x810] sm:$0xff]
    %v417 = vld [vmem:[#allocation5 + $0x818] sm:$0xff]
    %v418 = vld [vmem:[#allocation5 + $0x820] sm:$0xff]
    %v419 = vld [vmem:[#allocation5 + $0x828] sm:$0xff]
    %v420 = vld [vmem:[#allocation5 + $0x830] sm:$0xff]
    %v421 = vld [vmem:[#allocation5 + $0x838] sm:$0xff]
    %v422 = vld [vmem:[#allocation5 + $0x840] sm:$0xff]
    %v423 = vld [vmem:[#allocation5 + $0x848] sm:$0xff]
    %v424 = vld [vmem:[#allocation5 + $0x850] sm:$0xff]
    %v425 = vld [vmem:[#allocation5 + $0x858] sm:$0xff]
    %v426 = vld [vmem:[#allocation5 + $0x860] sm:$0xff]
    %v427 = vld [vmem:[#allocation5 + $0x868] sm:$0xff]
    %v428 = vld [vmem:[#allocation5 + $0x870] sm:$0xff]
    %v429 = vld [vmem:[#allocation5 + $0x878] sm:$0xff]
    %v430 = vld [vmem:[#allocation5 + $0x880] sm:$0xff]
    %v431 = vld [vmem:[#allocation5 + $0x888] sm:$0xff]
    %v432 = vld [vmem:[#allocation5 + $0x890] sm:$0xff]
    %v433 = vld [vmem:[#allocation5 + $0x898] sm:$0xff]
    %v434 = vld [vmem:[#allocation5 + $0x8a0] sm:$0xff]
    %v435 = vld [vmem:[#allocation5 + $0x8a8] sm:$0xff]
    %v436 = vld [vmem:[#allocation5 + $0x8b0] sm:$0xff]
    %v437 = vld [vmem:[#allocation5 + $0x8b8] sm:$0xff]
    %v438 = vld [vmem:[#allocation5 + $0x8c0] sm:$0xff]
    %v439 = vld [vmem:[#allocation5 + $0x8c8] sm:$0xff]
    %v440 = vld [vmem:[#allocation5 + $0x8d0] sm:$0xff]
    %v441 = vld [vmem:[#allocation5 + $0x8d8] sm:$0xff]
    %v442 = vld [vmem:[#allocation5 + $0x8e0] sm:$0xff]
    %v443 = vld [vmem:[#allocation5 + $0x8e8] sm:$0xff]
    %v444 = vld [vmem:[#allocation5 + $0x8f0] sm:$0xff]
    %v445 = vld [vmem:[#allocation5 + $0x8f8] sm:$0xff]
    %v446 = vld [vmem:[#allocation7] sm:$0xf]
    %v448 = vlaneseq
    %v449 = vshrl.u32 %v448, 7
    %v450 = vsub.s32 0, %v449
    %v451 = vrot.slane %v446, %v450
    %v452 = vlaneseq
    %v453 = vshrl.u32 %v452, 7
    %v454 = vsub.s32 1, %v453
    %v455 = vrot.slane %v446, %v454
    %v456 = vlaneseq
    %v457 = vshrl.u32 %v456, 7
    %v458 = vsub.s32 2, %v457
    %v459 = vrot.slane %v446, %v458
    %v460 = vlaneseq
    %v461 = vshrl.u32 %v460, 7
    %v462 = vsub.s32 3, %v461
    %v463 = vrot.slane %v446, %v462
    %v478 = vunpack.c.l.b16 %v148
    %v479 = vunpack.c.h.b16 %v148
    %v480 = vunpack.c.l.b16 %v149
    %v481 = vunpack.c.h.b16 %v149
    %v482 = vunpack.c.l.b16 %v150
    %v483 = vunpack.c.h.b16 %v150
    %v484 = vunpack.c.l.b16 %v151
    %v485 = vunpack.c.h.b16 %v151
    %v486 = vunpack.c.l.b16 %v152
    %v487 = vunpack.c.l.b16 %v153
    %v488 = vunpack.c.h.b16 %v153
    %v489 = vunpack.c.l.b16 %v154
    %v490 = vunpack.c.h.b16 %v154
    %v491 = vunpack.c.l.b16 %v155
    %v492 = vunpack.c.h.b16 %v155
    %v493 = vunpack.c.l.b16 %v156
    %v494 = vunpack.c.h.b16 %v156
    %v495 = vunpack.c.l.b16 %v157
    %v496 = vpack.c.b16 %v487, %v478
    %v497 = vpack.c.b16 %v488, %v479
    %v498 = vpack.c.b16 %v489, %v480
    %v499 = vpack.c.b16 %v490, %v481
    %v500 = vpack.c.b16 %v491, %v482
    %v501 = vpack.c.b16 %v492, %v483
    %v502 = vpack.c.b16 %v493, %v484
    %v503 = vpack.c.b16 %v494, %v485
    %v504 = vpack.c.b16 %v495, %v486
    %v802 = vunpack.c.l.b16 %v158
    %v803 = vunpack.c.h.b16 %v158
    %v804 = vunpack.c.l.b16 %v159
    %v805 = vunpack.c.h.b16 %v159
    %v806 = vunpack.c.l.b16 %v160
    %v807 = vunpack.c.h.b16 %v160
    %v808 = vunpack.c.l.b16 %v161
    %v809 = vunpack.c.h.b16 %v161
    %v810 = vunpack.c.l.b16 %v162
    %v811 = vunpack.c.h.b16 %v162
    %v812 = vunpack.c.l.b16 %v163
    %v813 = vunpack.c.h.b16 %v163
    %v814 = vunpack.c.l.b16 %v164
    %v815 = vunpack.c.h.b16 %v164
    %v816 = vunpack.c.l.b16 %v165
    %v817 = vunpack.c.h.b16 %v165
    %v818 = vunpack.c.l.b16 %v166
    %v819 = vunpack.c.h.b16 %v166
    %v820 = vunpack.c.l.b16 %v167
    %v821 = vunpack.c.h.b16 %v167
    %v822 = vunpack.c.l.b16 %v168
    %v823 = vunpack.c.h.b16 %v168
    %v824 = vunpack.c.l.b16 %v169
    %v825 = vunpack.c.h.b16 %v169
    %v826 = vunpack.c.l.b16 %v170
    %v827 = vunpack.c.h.b16 %v170
    %v828 = vunpack.c.l.b16 %v171
    %v829 = vunpack.c.h.b16 %v171
    %v830 = vunpack.c.l.b16 %v172
    %v831 = vunpack.c.h.b16 %v172
    %v832 = vunpack.c.l.b16 %v173
    %v833 = vunpack.c.h.b16 %v173
    %v834 = vunpack.c.l.b16 %v174
    %v835 = vunpack.c.h.b16 %v174
    %v836 = vunpack.c.l.b16 %v175
    %v837 = vunpack.c.h.b16 %v175
    %v838 = vunpack.c.l.b16 %v176
    %v839 = vunpack.c.h.b16 %v176
    %v840 = vunpack.c.l.b16 %v177
    %v841 = vunpack.c.h.b16 %v177
    %v842 = vunpack.c.l.b16 %v178
    %v843 = vunpack.c.h.b16 %v178
    %v844 = vunpack.c.l.b16 %v179
    %v845 = vunpack.c.h.b16 %v179
    %v846 = vunpack.c.l.b16 %v180
    %v847 = vunpack.c.h.b16 %v180
    %v848 = vunpack.c.l.b16 %v181
    %v849 = vunpack.c.h.b16 %v181
    %v850 = vunpack.c.l.b16 %v182
    %v851 = vunpack.c.h.b16 %v182
    %v852 = vunpack.c.l.b16 %v183
    %v853 = vunpack.c.h.b16 %v183
    %v854 = vunpack.c.l.b16 %v184
    %v855 = vunpack.c.h.b16 %v184
    %v856 = vunpack.c.l.b16 %v185
    %v857 = vunpack.c.h.b16 %v185
    %v858 = vunpack.c.l.b16 %v186
    %v859 = vunpack.c.h.b16 %v186
    %v860 = vunpack.c.l.b16 %v187
    %v861 = vunpack.c.h.b16 %v187
    %v862 = vunpack.c.l.b16 %v188
    %v863 = vunpack.c.h.b16 %v188
    %v864 = vunpack.c.l.b16 %v189
    %v865 = vunpack.c.h.b16 %v189
    %v866 = vunpack.c.l.b16 %v190
    %v867 = vunpack.c.h.b16 %v190
    %v868 = vunpack.c.l.b16 %v191
    %v869 = vunpack.c.h.b16 %v191
    %v870 = vunpack.c.l.b16 %v192
    %v871 = vunpack.c.h.b16 %v192
    %v872 = vunpack.c.l.b16 %v193
    %v873 = vunpack.c.h.b16 %v193
    %v874 = vunpack.c.l.b16 %v194
    %v875 = vunpack.c.h.b16 %v194
    %v876 = vunpack.c.l.b16 %v195
    %v877 = vunpack.c.h.b16 %v195
    %v878 = vunpack.c.l.b16 %v196
    %v879 = vunpack.c.h.b16 %v196
    %v880 = vunpack.c.l.b16 %v197
    %v881 = vunpack.c.h.b16 %v197
    %v882 = vunpack.c.l.b16 %v198
    %v883 = vunpack.c.h.b16 %v198
    %v884 = vunpack.c.l.b16 %v199
    %v885 = vunpack.c.h.b16 %v199
    %v886 = vunpack.c.l.b16 %v200
    %v887 = vunpack.c.h.b16 %v200
    %v888 = vunpack.c.l.b16 %v201
    %v889 = vunpack.c.h.b16 %v201
    %v890 = vunpack.c.l.b16 %v202
    %v891 = vunpack.c.h.b16 %v202
    %v892 = vunpack.c.l.b16 %v203
    %v893 = vunpack.c.h.b16 %v203
    %v894 = vunpack.c.l.b16 %v204
    %v895 = vunpack.c.h.b16 %v204
    %v896 = vunpack.c.l.b16 %v205
    %v897 = vunpack.c.h.b16 %v205
    %v898 = vunpack.c.l.b16 %v206
    %v899 = vunpack.c.h.b16 %v206
    %v900 = vunpack.c.l.b16 %v207
    %v901 = vunpack.c.h.b16 %v207
    %v902 = vunpack.c.l.b16 %v208
    %v903 = vunpack.c.h.b16 %v208
    %v904 = vunpack.c.l.b16 %v209
    %v905 = vunpack.c.h.b16 %v209
    %v906 = vunpack.c.l.b16 %v210
    %v907 = vunpack.c.h.b16 %v210
    %v908 = vunpack.c.l.b16 %v211
    %v909 = vunpack.c.h.b16 %v211
    %v910 = vunpack.c.l.b16 %v212
    %v911 = vunpack.c.h.b16 %v212
    %v912 = vunpack.c.l.b16 %v213
    %v913 = vunpack.c.h.b16 %v213
    %v914 = vunpack.c.l.b16 %v214
    %v915 = vunpack.c.h.b16 %v214
    %v916 = vunpack.c.l.b16 %v215
    %v917 = vunpack.c.h.b16 %v215
    %v918 = vunpack.c.l.b16 %v216
    %v919 = vunpack.c.h.b16 %v216
    %v920 = vunpack.c.l.b16 %v217
    %v921 = vunpack.c.h.b16 %v217
    %v922 = vunpack.c.l.b16 %v218
    %v923 = vunpack.c.h.b16 %v218
    %v924 = vunpack.c.l.b16 %v219
    %v925 = vunpack.c.h.b16 %v219
    %v926 = vunpack.c.l.b16 %v220
    %v927 = vunpack.c.h.b16 %v220
    %v928 = vunpack.c.l.b16 %v221
    %v929 = vunpack.c.h.b16 %v221
    %v930 = vunpack.c.l.b16 %v222
    %v931 = vunpack.c.h.b16 %v222
    %v932 = vunpack.c.l.b16 %v223
    %v933 = vunpack.c.h.b16 %v223
    %v934 = vunpack.c.l.b16 %v224
    %v935 = vunpack.c.h.b16 %v224
    %v936 = vunpack.c.l.b16 %v225
    %v937 = vunpack.c.h.b16 %v225
    %v938 = vunpack.c.l.b16 %v226
    %v939 = vunpack.c.h.b16 %v226
    %v940 = vunpack.c.l.b16 %v227
    %v941 = vunpack.c.h.b16 %v227
    %v942 = vunpack.c.l.b16 %v228
    %v943 = vunpack.c.h.b16 %v228
    %v944 = vunpack.c.l.b16 %v229
    %v945 = vunpack.c.h.b16 %v229
    %v946 = vunpack.c.l.b16 %v230
    %v947 = vunpack.c.h.b16 %v230
    %v948 = vunpack.c.l.b16 %v231
    %v949 = vunpack.c.h.b16 %v231
    %v950 = vunpack.c.l.b16 %v232
    %v951 = vunpack.c.h.b16 %v232
    %v952 = vunpack.c.l.b16 %v233
    %v953 = vunpack.c.h.b16 %v233
    %v954 = vunpack.c.l.b16 %v234
    %v955 = vunpack.c.h.b16 %v234
    %v956 = vunpack.c.l.b16 %v235
    %v957 = vunpack.c.h.b16 %v235
    %v958 = vunpack.c.l.b16 %v236
    %v959 = vunpack.c.h.b16 %v236
    %v960 = vunpack.c.l.b16 %v237
    %v961 = vunpack.c.h.b16 %v237
    %v962 = vunpack.c.l.b16 %v238
    %v963 = vunpack.c.h.b16 %v238
    %v964 = vunpack.c.l.b16 %v239
    %v965 = vunpack.c.h.b16 %v239
    %v966 = vunpack.c.l.b16 %v240
    %v967 = vunpack.c.h.b16 %v240
    %v968 = vunpack.c.l.b16 %v241
    %v969 = vunpack.c.h.b16 %v241
    %v970 = vunpack.c.l.b16 %v242
    %v971 = vunpack.c.h.b16 %v242
    %v972 = vunpack.c.l.b16 %v243
    %v973 = vunpack.c.h.b16 %v243
    %v974 = vunpack.c.l.b16 %v244
    %v975 = vunpack.c.h.b16 %v244
    %v976 = vunpack.c.l.b16 %v245
    %v977 = vunpack.c.h.b16 %v245
    %v978 = vunpack.c.l.b16 %v246
    %v979 = vunpack.c.h.b16 %v246
    %v980 = vunpack.c.l.b16 %v247
    %v981 = vunpack.c.h.b16 %v247
    %v982 = vunpack.c.l.b16 %v248
    %v983 = vunpack.c.h.b16 %v248
    %v984 = vunpack.c.l.b16 %v249
    %v985 = vunpack.c.h.b16 %v249
    %v986 = vunpack.c.l.b16 %v250
    %v987 = vunpack.c.h.b16 %v250
    %v988 = vunpack.c.l.b16 %v251
    %v989 = vunpack.c.h.b16 %v251
    %v990 = vunpack.c.l.b16 %v252
    %v991 = vunpack.c.h.b16 %v252
    %v992 = vunpack.c.l.b16 %v253
    %v993 = vunpack.c.h.b16 %v253
    %v994 = vunpack.c.l.b16 %v254
    %v995 = vunpack.c.h.b16 %v254
    %v996 = vunpack.c.l.b16 %v255
    %v997 = vunpack.c.h.b16 %v255
    %v998 = vunpack.c.l.b16 %v256
    %v999 = vunpack.c.h.b16 %v256
    %v1000 = vunpack.c.l.b16 %v257
    %v1001 = vunpack.c.h.b16 %v257
    %v1002 = vunpack.c.l.b16 %v258
    %v1003 = vunpack.c.h.b16 %v258
    %v1004 = vunpack.c.l.b16 %v259
    %v1005 = vunpack.c.h.b16 %v259
    %v1006 = vunpack.c.l.b16 %v260
    %v1007 = vunpack.c.h.b16 %v260
    %v1008 = vunpack.c.l.b16 %v261
    %v1009 = vunpack.c.h.b16 %v261
    %v1010 = vunpack.c.l.b16 %v262
    %v1011 = vunpack.c.h.b16 %v262
    %v1012 = vunpack.c.l.b16 %v263
    %v1013 = vunpack.c.h.b16 %v263
    %v1014 = vunpack.c.l.b16 %v264
    %v1015 = vunpack.c.h.b16 %v264
    %v1016 = vunpack.c.l.b16 %v265
    %v1017 = vunpack.c.h.b16 %v265
    %v1018 = vunpack.c.l.b16 %v266
    %v1019 = vunpack.c.h.b16 %v266
    %v1020 = vunpack.c.l.b16 %v267
    %v1021 = vunpack.c.h.b16 %v267
    %v1022 = vunpack.c.l.b16 %v268
    %v1023 = vunpack.c.h.b16 %v268
    %v1024 = vunpack.c.l.b16 %v269
    %v1025 = vunpack.c.h.b16 %v269
    %v1026 = vunpack.c.l.b16 %v270
    %v1027 = vunpack.c.h.b16 %v270
    %v1028 = vunpack.c.l.b16 %v271
    %v1029 = vunpack.c.h.b16 %v271
    %v1030 = vunpack.c.l.b16 %v272
    %v1031 = vunpack.c.h.b16 %v272
    %v1032 = vunpack.c.l.b16 %v273
    %v1033 = vunpack.c.h.b16 %v273
    %v1034 = vunpack.c.l.b16 %v274
    %v1035 = vunpack.c.h.b16 %v274
    %v1036 = vunpack.c.l.b16 %v275
    %v1037 = vunpack.c.h.b16 %v275
    %v1038 = vunpack.c.l.b16 %v276
    %v1039 = vunpack.c.h.b16 %v276
    %v1040 = vunpack.c.l.b16 %v277
    %v1041 = vunpack.c.h.b16 %v277
    %v1042 = vunpack.c.l.b16 %v278
    %v1043 = vunpack.c.h.b16 %v278
    %v1044 = vunpack.c.l.b16 %v279
    %v1045 = vunpack.c.h.b16 %v279
    %v1046 = vunpack.c.l.b16 %v280
    %v1047 = vunpack.c.h.b16 %v280
    %v1048 = vunpack.c.l.b16 %v281
    %v1049 = vunpack.c.h.b16 %v281
    %v1050 = vunpack.c.l.b16 %v282
    %v1051 = vunpack.c.h.b16 %v282
    %v1052 = vunpack.c.l.b16 %v283
    %v1053 = vunpack.c.h.b16 %v283
    %v1054 = vunpack.c.l.b16 %v284
    %v1055 = vunpack.c.h.b16 %v284
    %v1056 = vunpack.c.l.b16 %v285
    %v1057 = vunpack.c.h.b16 %v285
    %v1058 = vunpack.c.l.b16 %v286
    %v1059 = vunpack.c.h.b16 %v286
    %v1060 = vunpack.c.l.b16 %v287
    %v1061 = vunpack.c.h.b16 %v287
    %v1062 = vunpack.c.l.b16 %v288
    %v1063 = vunpack.c.h.b16 %v288
    %v1064 = vunpack.c.l.b16 %v289
    %v1065 = vunpack.c.h.b16 %v289
    %v1066 = vunpack.c.l.b16 %v290
    %v1067 = vunpack.c.h.b16 %v290
    %v1068 = vunpack.c.l.b16 %v291
    %v1069 = vunpack.c.h.b16 %v291
    %v1070 = vunpack.c.l.b16 %v292
    %v1071 = vunpack.c.h.b16 %v292
    %v1072 = vunpack.c.l.b16 %v293
    %v1073 = vunpack.c.h.b16 %v293
    %v1074 = vunpack.c.l.b16 %v294
    %v1075 = vunpack.c.h.b16 %v294
    %v1076 = vunpack.c.l.b16 %v295
    %v1077 = vunpack.c.h.b16 %v295
    %v1078 = vunpack.c.l.b16 %v296
    %v1079 = vunpack.c.h.b16 %v296
    %v1080 = vunpack.c.l.b16 %v297
    %v1081 = vunpack.c.h.b16 %v297
    %v1082 = vunpack.c.l.b16 %v298
    %v1083 = vunpack.c.h.b16 %v298
    %v1084 = vunpack.c.l.b16 %v299
    %v1085 = vunpack.c.h.b16 %v299
    %v1086 = vunpack.c.l.b16 %v300
    %v1087 = vunpack.c.h.b16 %v300
    %v1088 = vunpack.c.l.b16 %v301
    %v1089 = vunpack.c.h.b16 %v301
    %v1090 = vunpack.c.l.b16 %v302
    %v1091 = vunpack.c.h.b16 %v302
    %v1092 = vunpack.c.l.b16 %v303
    %v1093 = vunpack.c.h.b16 %v303
    %v1094 = vunpack.c.l.b16 %v304
    %v1095 = vunpack.c.h.b16 %v304
    %v1096 = vunpack.c.l.b16 %v305
    %v1097 = vunpack.c.h.b16 %v305
    %v1098 = vunpack.c.l.b16 %v306
    %v1099 = vunpack.c.h.b16 %v306
    %v1100 = vunpack.c.l.b16 %v307
    %v1101 = vunpack.c.h.b16 %v307
    %v1102 = vunpack.c.l.b16 %v308
    %v1103 = vunpack.c.h.b16 %v308
    %v1104 = vunpack.c.l.b16 %v309
    %v1105 = vunpack.c.h.b16 %v309
    %v1106 = vunpack.c.l.b16 %v310
    %v1107 = vunpack.c.h.b16 %v310
    %v1108 = vunpack.c.l.b16 %v311
    %v1109 = vunpack.c.h.b16 %v311
    %v1110 = vunpack.c.l.b16 %v312
    %v1111 = vunpack.c.h.b16 %v312
    %v1112 = vunpack.c.l.b16 %v313
    %v1113 = vunpack.c.h.b16 %v313
    %v1114 = vunpack.c.l.b16 %v314
    %v1115 = vunpack.c.h.b16 %v314
    %v1116 = vunpack.c.l.b16 %v315
    %v1117 = vunpack.c.h.b16 %v315
    %v1118 = vunpack.c.l.b16 %v316
    %v1119 = vunpack.c.h.b16 %v316
    %v1120 = vunpack.c.l.b16 %v317
    %v1121 = vunpack.c.h.b16 %v317
    %v1122 = vunpack.c.l.b16 %v318
    %v1123 = vunpack.c.h.b16 %v318
    %v1124 = vunpack.c.l.b16 %v319
    %v1125 = vunpack.c.h.b16 %v319
    %v1126 = vunpack.c.l.b16 %v320
    %v1127 = vunpack.c.h.b16 %v320
    %v1128 = vunpack.c.l.b16 %v321
    %v1129 = vunpack.c.h.b16 %v321
    %v1130 = vunpack.c.l.b16 %v322
    %v1131 = vunpack.c.h.b16 %v322
    %v1132 = vunpack.c.l.b16 %v323
    %v1133 = vunpack.c.h.b16 %v323
    %v1134 = vunpack.c.l.b16 %v324
    %v1135 = vunpack.c.h.b16 %v324
    %v1136 = vunpack.c.l.b16 %v325
    %v1137 = vunpack.c.h.b16 %v325
    %v1138 = vunpack.c.l.b16 %v326
    %v1139 = vunpack.c.h.b16 %v326
    %v1140 = vunpack.c.l.b16 %v327
    %v1141 = vunpack.c.h.b16 %v327
    %v1142 = vunpack.c.l.b16 %v328
    %v1143 = vunpack.c.h.b16 %v328
    %v1144 = vunpack.c.l.b16 %v329
    %v1145 = vunpack.c.h.b16 %v329
    %v1146 = vunpack.c.l.b16 %v330
    %v1147 = vunpack.c.h.b16 %v330
    %v1148 = vunpack.c.l.b16 %v331
    %v1149 = vunpack.c.h.b16 %v331
    %v1150 = vunpack.c.l.b16 %v332
    %v1151 = vunpack.c.h.b16 %v332
    %v1152 = vunpack.c.l.b16 %v333
    %v1153 = vunpack.c.h.b16 %v333
    %v1154 = vunpack.c.l.b16 %v334
    %v1155 = vunpack.c.h.b16 %v334
    %v1156 = vunpack.c.l.b16 %v335
    %v1157 = vunpack.c.h.b16 %v335
    %v1158 = vunpack.c.l.b16 %v336
    %v1159 = vunpack.c.h.b16 %v336
    %v1160 = vunpack.c.l.b16 %v337
    %v1161 = vunpack.c.h.b16 %v337
    %v1162 = vunpack.c.l.b16 %v338
    %v1163 = vunpack.c.h.b16 %v338
    %v1164 = vunpack.c.l.b16 %v339
    %v1165 = vunpack.c.h.b16 %v339
    %v1166 = vunpack.c.l.b16 %v340
    %v1167 = vunpack.c.h.b16 %v340
    %v1168 = vunpack.c.l.b16 %v341
    %v1169 = vunpack.c.h.b16 %v341
    %v1170 = vunpack.c.l.b16 %v342
    %v1171 = vunpack.c.h.b16 %v342
    %v1172 = vunpack.c.l.b16 %v343
    %v1173 = vunpack.c.h.b16 %v343
    %v1174 = vunpack.c.l.b16 %v344
    %v1175 = vunpack.c.h.b16 %v344
    %v1176 = vunpack.c.l.b16 %v345
    %v1177 = vunpack.c.h.b16 %v345
    %v1178 = vunpack.c.l.b16 %v346
    %v1179 = vunpack.c.h.b16 %v346
    %v1180 = vunpack.c.l.b16 %v347
    %v1181 = vunpack.c.h.b16 %v347
    %v1182 = vunpack.c.l.b16 %v348
    %v1183 = vunpack.c.h.b16 %v348
    %v1184 = vunpack.c.l.b16 %v349
    %v1185 = vunpack.c.h.b16 %v349
    %v1186 = vunpack.c.l.b16 %v350
    %v1187 = vunpack.c.h.b16 %v350
    %v1188 = vunpack.c.l.b16 %v351
    %v1189 = vunpack.c.h.b16 %v351
    %v1190 = vunpack.c.l.b16 %v352
    %v1191 = vunpack.c.h.b16 %v352
    %v1192 = vunpack.c.l.b16 %v353
    %v1193 = vunpack.c.h.b16 %v353
    %v1194 = vunpack.c.l.b16 %v354
    %v1195 = vunpack.c.h.b16 %v354
    %v1196 = vunpack.c.l.b16 %v355
    %v1197 = vunpack.c.h.b16 %v355
    %v1198 = vunpack.c.l.b16 %v356
    %v1199 = vunpack.c.h.b16 %v356
    %v1200 = vunpack.c.l.b16 %v357
    %v1201 = vunpack.c.h.b16 %v357
    %v1202 = vunpack.c.l.b16 %v358
    %v1203 = vunpack.c.h.b16 %v358
    %v1204 = vunpack.c.l.b16 %v359
    %v1205 = vunpack.c.h.b16 %v359
    %v1206 = vunpack.c.l.b16 %v360
    %v1207 = vunpack.c.h.b16 %v360
    %v1208 = vunpack.c.l.b16 %v361
    %v1209 = vunpack.c.h.b16 %v361
    %v1210 = vunpack.c.l.b16 %v362
    %v1211 = vunpack.c.h.b16 %v362
    %v1212 = vunpack.c.l.b16 %v363
    %v1213 = vunpack.c.h.b16 %v363
    %v1214 = vunpack.c.l.b16 %v364
    %v1215 = vunpack.c.h.b16 %v364
    %v1216 = vunpack.c.l.b16 %v365
    %v1217 = vunpack.c.h.b16 %v365
    %v1218 = vunpack.c.l.b16 %v366
    %v1219 = vunpack.c.h.b16 %v366
    %v1220 = vunpack.c.l.b16 %v367
    %v1221 = vunpack.c.h.b16 %v367
    %v1222 = vunpack.c.l.b16 %v368
    %v1223 = vunpack.c.h.b16 %v368
    %v1224 = vunpack.c.l.b16 %v369
    %v1225 = vunpack.c.h.b16 %v369
    %v1226 = vunpack.c.l.b16 %v370
    %v1227 = vunpack.c.h.b16 %v370
    %v1228 = vunpack.c.l.b16 %v371
    %v1229 = vunpack.c.h.b16 %v371
    %v1230 = vunpack.c.l.b16 %v372
    %v1231 = vunpack.c.h.b16 %v372
    %v1232 = vunpack.c.l.b16 %v373
    %v1233 = vunpack.c.h.b16 %v373
    %v1234 = vunpack.c.l.b16 %v374
    %v1235 = vunpack.c.h.b16 %v374
    %v1236 = vunpack.c.l.b16 %v375
    %v1237 = vunpack.c.h.b16 %v375
    %v1238 = vunpack.c.l.b16 %v376
    %v1239 = vunpack.c.h.b16 %v376
    %v1240 = vunpack.c.l.b16 %v377
    %v1241 = vunpack.c.h.b16 %v377
    %v1242 = vunpack.c.l.b16 %v378
    %v1243 = vunpack.c.h.b16 %v378
    %v1244 = vunpack.c.l.b16 %v379
    %v1245 = vunpack.c.h.b16 %v379
    %v1246 = vunpack.c.l.b16 %v380
    %v1247 = vunpack.c.h.b16 %v380
    %v1248 = vunpack.c.l.b16 %v381
    %v1249 = vunpack.c.h.b16 %v381
    %v1250 = vunpack.c.l.b16 %v382
    %v1251 = vunpack.c.h.b16 %v382
    %v1252 = vunpack.c.l.b16 %v383
    %v1253 = vunpack.c.h.b16 %v383
    %v1254 = vunpack.c.l.b16 %v384
    %v1255 = vunpack.c.h.b16 %v384
    %v1256 = vunpack.c.l.b16 %v385
    %v1257 = vunpack.c.h.b16 %v385
    %v1258 = vunpack.c.l.b16 %v386
    %v1259 = vunpack.c.h.b16 %v386
    %v1260 = vunpack.c.l.b16 %v387
    %v1261 = vunpack.c.h.b16 %v387
    %v1262 = vunpack.c.l.b16 %v388
    %v1263 = vunpack.c.h.b16 %v388
    %v1264 = vunpack.c.l.b16 %v389
    %v1265 = vunpack.c.h.b16 %v389
    %v1266 = vunpack.c.l.b16 %v390
    %v1267 = vunpack.c.h.b16 %v390
    %v1268 = vunpack.c.l.b16 %v391
    %v1269 = vunpack.c.h.b16 %v391
    %v1270 = vunpack.c.l.b16 %v392
    %v1271 = vunpack.c.h.b16 %v392
    %v1272 = vunpack.c.l.b16 %v393
    %v1273 = vunpack.c.h.b16 %v393
    %v1274 = vunpack.c.l.b16 %v394
    %v1275 = vunpack.c.h.b16 %v394
    %v1276 = vunpack.c.l.b16 %v395
    %v1277 = vunpack.c.h.b16 %v395
    %v1278 = vunpack.c.l.b16 %v396
    %v1279 = vunpack.c.h.b16 %v396
    %v1280 = vunpack.c.l.b16 %v397
    %v1281 = vunpack.c.h.b16 %v397
    %v1282 = vunpack.c.l.b16 %v398
    %v1283 = vunpack.c.h.b16 %v398
    %v1284 = vunpack.c.l.b16 %v399
    %v1285 = vunpack.c.h.b16 %v399
    %v1286 = vunpack.c.l.b16 %v400
    %v1287 = vunpack.c.h.b16 %v400
    %v1288 = vunpack.c.l.b16 %v401
    %v1289 = vunpack.c.h.b16 %v401
    %v1290 = vunpack.c.l.b16 %v402
    %v1291 = vunpack.c.h.b16 %v402
    %v1292 = vunpack.c.l.b16 %v403
    %v1293 = vunpack.c.h.b16 %v403
    %v1294 = vunpack.c.l.b16 %v404
    %v1295 = vunpack.c.h.b16 %v404
    %v1296 = vunpack.c.l.b16 %v405
    %v1297 = vunpack.c.h.b16 %v405
    %v1298 = vunpack.c.l.b16 %v406
    %v1299 = vunpack.c.h.b16 %v406
    %v1300 = vunpack.c.l.b16 %v407
    %v1301 = vunpack.c.h.b16 %v407
    %v1302 = vunpack.c.l.b16 %v408
    %v1303 = vunpack.c.h.b16 %v408
    %v1304 = vunpack.c.l.b16 %v409
    %v1305 = vunpack.c.h.b16 %v409
    %v1306 = vunpack.c.l.b16 %v410
    %v1307 = vunpack.c.h.b16 %v410
    %v1308 = vunpack.c.l.b16 %v411
    %v1309 = vunpack.c.h.b16 %v411
    %v1310 = vunpack.c.l.b16 %v412
    %v1311 = vunpack.c.h.b16 %v412
    %v1312 = vunpack.c.l.b16 %v413
    %v1313 = vunpack.c.h.b16 %v413
    %v1314 = vunpack.c.l.b16 %v414
    %v1315 = vunpack.c.h.b16 %v414
    %v1316 = vunpack.c.l.b16 %v415
    %v1317 = vunpack.c.h.b16 %v415
    %v1318 = vunpack.c.l.b16 %v416
    %v1319 = vunpack.c.h.b16 %v416
    %v1320 = vunpack.c.l.b16 %v417
    %v1321 = vunpack.c.h.b16 %v417
    %v1322 = vunpack.c.l.b16 %v418
    %v1323 = vunpack.c.h.b16 %v418
    %v1324 = vunpack.c.l.b16 %v419
    %v1325 = vunpack.c.h.b16 %v419
    %v1326 = vunpack.c.l.b16 %v420
    %v1327 = vunpack.c.h.b16 %v420
    %v1328 = vunpack.c.l.b16 %v421
    %v1329 = vunpack.c.h.b16 %v421
    %v1330 = vunpack.c.l.b16 %v422
    %v1331 = vunpack.c.h.b16 %v422
    %v1332 = vunpack.c.l.b16 %v423
    %v1333 = vunpack.c.h.b16 %v423
    %v1334 = vunpack.c.l.b16 %v424
    %v1335 = vunpack.c.h.b16 %v424
    %v1336 = vunpack.c.l.b16 %v425
    %v1337 = vunpack.c.h.b16 %v425
    %v1338 = vunpack.c.l.b16 %v426
    %v1339 = vunpack.c.h.b16 %v426
    %v1340 = vunpack.c.l.b16 %v427
    %v1341 = vunpack.c.h.b16 %v427
    %v1342 = vunpack.c.l.b16 %v428
    %v1343 = vunpack.c.h.b16 %v428
    %v1344 = vunpack.c.l.b16 %v429
    %v1345 = vunpack.c.h.b16 %v429
    %v1346 = vunpack.c.l.b16 %v430
    %v1347 = vunpack.c.h.b16 %v430
    %v1348 = vunpack.c.l.b16 %v431
    %v1349 = vunpack.c.h.b16 %v431
    %v1350 = vunpack.c.l.b16 %v432
    %v1351 = vunpack.c.h.b16 %v432
    %v1352 = vunpack.c.l.b16 %v433
    %v1353 = vunpack.c.h.b16 %v433
    %v1354 = vunpack.c.l.b16 %v434
    %v1355 = vunpack.c.h.b16 %v434
    %v1356 = vunpack.c.l.b16 %v435
    %v1357 = vunpack.c.h.b16 %v435
    %v1358 = vunpack.c.l.b16 %v436
    %v1359 = vunpack.c.h.b16 %v436
    %v1360 = vunpack.c.l.b16 %v437
    %v1361 = vunpack.c.h.b16 %v437
    %v1362 = vunpack.c.l.b16 %v438
    %v1363 = vunpack.c.h.b16 %v438
    %v1364 = vunpack.c.l.b16 %v439
    %v1365 = vunpack.c.h.b16 %v439
    %v1366 = vunpack.c.l.b16 %v440
    %v1367 = vunpack.c.h.b16 %v440
    %v1368 = vunpack.c.l.b16 %v441
    %v1369 = vunpack.c.h.b16 %v441
    %v1370 = vunpack.c.l.b16 %v442
    %v1371 = vunpack.c.h.b16 %v442
    %v1372 = vunpack.c.l.b16 %v443
    %v1373 = vunpack.c.h.b16 %v443
    %v1374 = vunpack.c.l.b16 %v444
    %v1375 = vunpack.c.h.b16 %v444
    %v1376 = vunpack.c.l.b16 %v445
    %v1377 = vunpack.c.h.b16 %v445
    %v1378 = vpack.c.b16 %v806, %v802
    %v1379 = vpack.c.b16 %v807, %v803
    %v1380 = vpack.c.b16 %v808, %v804
    %v1381 = vpack.c.b16 %v809, %v805
    %v1382 = vpack.c.b16 %v814, %v810
    %v1383 = vpack.c.b16 %v815, %v811
    %v1384 = vpack.c.b16 %v816, %v812
    %v1385 = vpack.c.b16 %v817, %v813
    %v1386 = vpack.c.b16 %v822, %v818
    %v1387 = vpack.c.b16 %v823, %v819
    %v1388 = vpack.c.b16 %v824, %v820
    %v1389 = vpack.c.b16 %v825, %v821
    %v1390 = vpack.c.b16 %v830, %v826
    %v1391 = vpack.c.b16 %v831, %v827
    %v1392 = vpack.c.b16 %v832, %v828
    %v1393 = vpack.c.b16 %v833, %v829
    %v1394 = vpack.c.b16 %v838, %v834
    %v1395 = vpack.c.b16 %v839, %v835
    %v1396 = vpack.c.b16 %v840, %v836
    %v1397 = vpack.c.b16 %v841, %v837
    %v1398 = vpack.c.b16 %v846, %v842
    %v1399 = vpack.c.b16 %v847, %v843
    %v1400 = vpack.c.b16 %v848, %v844
    %v1401 = vpack.c.b16 %v849, %v845
    %v1402 = vpack.c.b16 %v854, %v850
    %v1403 = vpack.c.b16 %v855, %v851
    %v1404 = vpack.c.b16 %v856, %v852
    %v1405 = vpack.c.b16 %v857, %v853
    %v1406 = vpack.c.b16 %v862, %v858
    %v1407 = vpack.c.b16 %v863, %v859
    %v1408 = vpack.c.b16 %v864, %v860
    %v1409 = vpack.c.b16 %v865, %v861
    %v1410 = vpack.c.b16 %v870, %v866
    %v1411 = vpack.c.b16 %v871, %v867
    %v1412 = vpack.c.b16 %v872, %v868
    %v1413 = vpack.c.b16 %v873, %v869
    %v1414 = vpack.c.b16 %v878, %v874
    %v1415 = vpack.c.b16 %v879, %v875
    %v1416 = vpack.c.b16 %v880, %v876
    %v1417 = vpack.c.b16 %v881, %v877
    %v1418 = vpack.c.b16 %v886, %v882
    %v1419 = vpack.c.b16 %v887, %v883
    %v1420 = vpack.c.b16 %v888, %v884
    %v1421 = vpack.c.b16 %v889, %v885
    %v1422 = vpack.c.b16 %v894, %v890
    %v1423 = vpack.c.b16 %v895, %v891
    %v1424 = vpack.c.b16 %v896, %v892
    %v1425 = vpack.c.b16 %v897, %v893
    %v1426 = vpack.c.b16 %v902, %v898
    %v1427 = vpack.c.b16 %v903, %v899
    %v1428 = vpack.c.b16 %v904, %v900
    %v1429 = vpack.c.b16 %v905, %v901
    %v1430 = vpack.c.b16 %v910, %v906
    %v1431 = vpack.c.b16 %v911, %v907
    %v1432 = vpack.c.b16 %v912, %v908
    %v1433 = vpack.c.b16 %v913, %v909
    %v1434 = vpack.c.b16 %v918, %v914
    %v1435 = vpack.c.b16 %v919, %v915
    %v1436 = vpack.c.b16 %v920, %v916
    %v1437 = vpack.c.b16 %v921, %v917
    %v1438 = vpack.c.b16 %v926, %v922
    %v1439 = vpack.c.b16 %v927, %v923
    %v1440 = vpack.c.b16 %v928, %v924
    %v1441 = vpack.c.b16 %v929, %v925
    %v1442 = vpack.c.b16 %v934, %v930
    %v1443 = vpack.c.b16 %v935, %v931
    %v1444 = vpack.c.b16 %v936, %v932
    %v1445 = vpack.c.b16 %v937, %v933
    %v1446 = vpack.c.b16 %v942, %v938
    %v1447 = vpack.c.b16 %v943, %v939
    %v1448 = vpack.c.b16 %v944, %v940
    %v1449 = vpack.c.b16 %v945, %v941
    %v1450 = vpack.c.b16 %v950, %v946
    %v1451 = vpack.c.b16 %v951, %v947
    %v1452 = vpack.c.b16 %v952, %v948
    %v1453 = vpack.c.b16 %v953, %v949
    %v1454 = vpack.c.b16 %v958, %v954
    %v1455 = vpack.c.b16 %v959, %v955
    %v1456 = vpack.c.b16 %v960, %v956
    %v1457 = vpack.c.b16 %v961, %v957
    %v1458 = vpack.c.b16 %v966, %v962
    %v1459 = vpack.c.b16 %v967, %v963
    %v1460 = vpack.c.b16 %v968, %v964
    %v1461 = vpack.c.b16 %v969, %v965
    %v1462 = vpack.c.b16 %v974, %v970
    %v1463 = vpack.c.b16 %v975, %v971
    %v1464 = vpack.c.b16 %v976, %v972
    %v1465 = vpack.c.b16 %v977, %v973
    %v1466 = vpack.c.b16 %v982, %v978
    %v1467 = vpack.c.b16 %v983, %v979
    %v1468 = vpack.c.b16 %v984, %v980
    %v1469 = vpack.c.b16 %v985, %v981
    %v1470 = vpack.c.b16 %v990, %v986
    %v1471 = vpack.c.b16 %v991, %v987
    %v1472 = vpack.c.b16 %v992, %v988
    %v1473 = vpack.c.b16 %v993, %v989
    %v1474 = vpack.c.b16 %v998, %v994
    %v1475 = vpack.c.b16 %v999, %v995
    %v1476 = vpack.c.b16 %v1000, %v996
    %v1477 = vpack.c.b16 %v1001, %v997
    %v1478 = vpack.c.b16 %v1006, %v1002
    %v1479 = vpack.c.b16 %v1007, %v1003
    %v1480 = vpack.c.b16 %v1008, %v1004
    %v1481 = vpack.c.b16 %v1009, %v1005
    %v1482 = vpack.c.b16 %v1014, %v1010
    %v1483 = vpack.c.b16 %v1015, %v1011
    %v1484 = vpack.c.b16 %v1016, %v1012
    %v1485 = vpack.c.b16 %v1017, %v1013
    %v1486 = vpack.c.b16 %v1022, %v1018
    %v1487 = vpack.c.b16 %v1023, %v1019
    %v1488 = vpack.c.b16 %v1024, %v1020
    %v1489 = vpack.c.b16 %v1025, %v1021
    %v1490 = vpack.c.b16 %v1030, %v1026
    %v1491 = vpack.c.b16 %v1031, %v1027
    %v1492 = vpack.c.b16 %v1032, %v1028
    %v1493 = vpack.c.b16 %v1033, %v1029
    %v1494 = vpack.c.b16 %v1038, %v1034
    %v1495 = vpack.c.b16 %v1039, %v1035
    %v1496 = vpack.c.b16 %v1040, %v1036
    %v1497 = vpack.c.b16 %v1041, %v1037
    %v1498 = vpack.c.b16 %v1046, %v1042
    %v1499 = vpack.c.b16 %v1047, %v1043
    %v1500 = vpack.c.b16 %v1048, %v1044
    %v1501 = vpack.c.b16 %v1049, %v1045
    %v1502 = vpack.c.b16 %v1054, %v1050
    %v1503 = vpack.c.b16 %v1055, %v1051
    %v1504 = vpack.c.b16 %v1056, %v1052
    %v1505 = vpack.c.b16 %v1057, %v1053
    %v1506 = vpack.c.b16 %v1062, %v1058
    %v1507 = vpack.c.b16 %v1063, %v1059
    %v1508 = vpack.c.b16 %v1064, %v1060
    %v1509 = vpack.c.b16 %v1065, %v1061
    %v1510 = vpack.c.b16 %v1070, %v1066
    %v1511 = vpack.c.b16 %v1071, %v1067
    %v1512 = vpack.c.b16 %v1072, %v1068
    %v1513 = vpack.c.b16 %v1073, %v1069
    %v1514 = vpack.c.b16 %v1078, %v1074
    %v1515 = vpack.c.b16 %v1079, %v1075
    %v1516 = vpack.c.b16 %v1080, %v1076
    %v1517 = vpack.c.b16 %v1081, %v1077
    %v1518 = vpack.c.b16 %v1086, %v1082
    %v1519 = vpack.c.b16 %v1087, %v1083
    %v1520 = vpack.c.b16 %v1088, %v1084
    %v1521 = vpack.c.b16 %v1089, %v1085
    %v1522 = vpack.c.b16 %v1094, %v1090
    %v1523 = vpack.c.b16 %v1095, %v1091
    %v1524 = vpack.c.b16 %v1096, %v1092
    %v1525 = vpack.c.b16 %v1097, %v1093
    %v1526 = vpack.c.b16 %v1102, %v1098
    %v1527 = vpack.c.b16 %v1103, %v1099
    %v1528 = vpack.c.b16 %v1104, %v1100
    %v1529 = vpack.c.b16 %v1105, %v1101
    %v1530 = vpack.c.b16 %v1110, %v1106
    %v1531 = vpack.c.b16 %v1111, %v1107
    %v1532 = vpack.c.b16 %v1112, %v1108
    %v1533 = vpack.c.b16 %v1113, %v1109
    %v1534 = vpack.c.b16 %v1118, %v1114
    %v1535 = vpack.c.b16 %v1119, %v1115
    %v1536 = vpack.c.b16 %v1120, %v1116
    %v1537 = vpack.c.b16 %v1121, %v1117
    %v1538 = vpack.c.b16 %v1126, %v1122
    %v1539 = vpack.c.b16 %v1127, %v1123
    %v1540 = vpack.c.b16 %v1128, %v1124
    %v1541 = vpack.c.b16 %v1129, %v1125
    %v1542 = vpack.c.b16 %v1134, %v1130
    %v1543 = vpack.c.b16 %v1135, %v1131
    %v1544 = vpack.c.b16 %v1136, %v1132
    %v1545 = vpack.c.b16 %v1137, %v1133
    %v1546 = vpack.c.b16 %v1142, %v1138
    %v1547 = vpack.c.b16 %v1143, %v1139
    %v1548 = vpack.c.b16 %v1144, %v1140
    %v1549 = vpack.c.b16 %v1145, %v1141
    %v1550 = vpack.c.b16 %v1150, %v1146
    %v1551 = vpack.c.b16 %v1151, %v1147
    %v1552 = vpack.c.b16 %v1152, %v1148
    %v1553 = vpack.c.b16 %v1153, %v1149
    %v1554 = vpack.c.b16 %v1158, %v1154
    %v1555 = vpack.c.b16 %v1159, %v1155
    %v1556 = vpack.c.b16 %v1160, %v1156
    %v1557 = vpack.c.b16 %v1161, %v1157
    %v1558 = vpack.c.b16 %v1166, %v1162
    %v1559 = vpack.c.b16 %v1167, %v1163
    %v1560 = vpack.c.b16 %v1168, %v1164
    %v1561 = vpack.c.b16 %v1169, %v1165
    %v1562 = vpack.c.b16 %v1174, %v1170
    %v1563 = vpack.c.b16 %v1175, %v1171
    %v1564 = vpack.c.b16 %v1176, %v1172
    %v1565 = vpack.c.b16 %v1177, %v1173
    %v1566 = vpack.c.b16 %v1182, %v1178
    %v1567 = vpack.c.b16 %v1183, %v1179
    %v1568 = vpack.c.b16 %v1184, %v1180
    %v1569 = vpack.c.b16 %v1185, %v1181
    %v1570 = vpack.c.b16 %v1190, %v1186
    %v1571 = vpack.c.b16 %v1191, %v1187
    %v1572 = vpack.c.b16 %v1192, %v1188
    %v1573 = vpack.c.b16 %v1193, %v1189
    %v1574 = vpack.c.b16 %v1198, %v1194
    %v1575 = vpack.c.b16 %v1199, %v1195
    %v1576 = vpack.c.b16 %v1200, %v1196
    %v1577 = vpack.c.b16 %v1201, %v1197
    %v1578 = vpack.c.b16 %v1206, %v1202
    %v1579 = vpack.c.b16 %v1207, %v1203
    %v1580 = vpack.c.b16 %v1208, %v1204
    %v1581 = vpack.c.b16 %v1209, %v1205
    %v1582 = vpack.c.b16 %v1214, %v1210
    %v1583 = vpack.c.b16 %v1215, %v1211
    %v1584 = vpack.c.b16 %v1216, %v1212
    %v1585 = vpack.c.b16 %v1217, %v1213
    %v1586 = vpack.c.b16 %v1222, %v1218
    %v1587 = vpack.c.b16 %v1223, %v1219
    %v1588 = vpack.c.b16 %v1224, %v1220
    %v1589 = vpack.c.b16 %v1225, %v1221
    %v1590 = vpack.c.b16 %v1230, %v1226
    %v1591 = vpack.c.b16 %v1231, %v1227
    %v1592 = vpack.c.b16 %v1232, %v1228
    %v1593 = vpack.c.b16 %v1233, %v1229
    %v1594 = vpack.c.b16 %v1238, %v1234
    %v1595 = vpack.c.b16 %v1239, %v1235
    %v1596 = vpack.c.b16 %v1240, %v1236
    %v1597 = vpack.c.b16 %v1241, %v1237
    %v1598 = vpack.c.b16 %v1246, %v1242
    %v1599 = vpack.c.b16 %v1247, %v1243
    %v1600 = vpack.c.b16 %v1248, %v1244
    %v1601 = vpack.c.b16 %v1249, %v1245
    %v1602 = vpack.c.b16 %v1254, %v1250
    %v1603 = vpack.c.b16 %v1255, %v1251
    %v1604 = vpack.c.b16 %v1256, %v1252
    %v1605 = vpack.c.b16 %v1257, %v1253
    %v1606 = vpack.c.b16 %v1262, %v1258
    %v1607 = vpack.c.b16 %v1263, %v1259
    %v1608 = vpack.c.b16 %v1264, %v1260
    %v1609 = vpack.c.b16 %v1265, %v1261
    %v1610 = vpack.c.b16 %v1270, %v1266
    %v1611 = vpack.c.b16 %v1271, %v1267
    %v1612 = vpack.c.b16 %v1272, %v1268
    %v1613 = vpack.c.b16 %v1273, %v1269
    %v1614 = vpack.c.b16 %v1278, %v1274
    %v1615 = vpack.c.b16 %v1279, %v1275
    %v1616 = vpack.c.b16 %v1280, %v1276
    %v1617 = vpack.c.b16 %v1281, %v1277
    %v1618 = vpack.c.b16 %v1286, %v1282
    %v1619 = vpack.c.b16 %v1287, %v1283
    %v1620 = vpack.c.b16 %v1288, %v1284
    %v1621 = vpack.c.b16 %v1289, %v1285
    %v1622 = vpack.c.b16 %v1294, %v1290
    %v1623 = vpack.c.b16 %v1295, %v1291
    %v1624 = vpack.c.b16 %v1296, %v1292
    %v1625 = vpack.c.b16 %v1297, %v1293
    %v1626 = vpack.c.b16 %v1302, %v1298
    %v1627 = vpack.c.b16 %v1303, %v1299
    %v1628 = vpack.c.b16 %v1304, %v1300
    %v1629 = vpack.c.b16 %v1305, %v1301
    %v1630 = vpack.c.b16 %v1310, %v1306
    %v1631 = vpack.c.b16 %v1311, %v1307
    %v1632 = vpack.c.b16 %v1312, %v1308
    %v1633 = vpack.c.b16 %v1313, %v1309
    %v1634 = vpack.c.b16 %v1318, %v1314
    %v1635 = vpack.c.b16 %v1319, %v1315
    %v1636 = vpack.c.b16 %v1320, %v1316
    %v1637 = vpack.c.b16 %v1321, %v1317
    %v1638 = vpack.c.b16 %v1326, %v1322
    %v1639 = vpack.c.b16 %v1327, %v1323
    %v1640 = vpack.c.b16 %v1328, %v1324
    %v1641 = vpack.c.b16 %v1329, %v1325
    %v1642 = vpack.c.b16 %v1334, %v1330
    %v1643 = vpack.c.b16 %v1335, %v1331
    %v1644 = vpack.c.b16 %v1336, %v1332
    %v1645 = vpack.c.b16 %v1337, %v1333
    %v1646 = vpack.c.b16 %v1342, %v1338
    %v1647 = vpack.c.b16 %v1343, %v1339
    %v1648 = vpack.c.b16 %v1344, %v1340
    %v1649 = vpack.c.b16 %v1345, %v1341
    %v1650 = vpack.c.b16 %v1350, %v1346
    %v1651 = vpack.c.b16 %v1351, %v1347
    %v1652 = vpack.c.b16 %v1352, %v1348
    %v1653 = vpack.c.b16 %v1353, %v1349
    %v1654 = vpack.c.b16 %v1358, %v1354
    %v1655 = vpack.c.b16 %v1359, %v1355
    %v1656 = vpack.c.b16 %v1360, %v1356
    %v1657 = vpack.c.b16 %v1361, %v1357
    %v1658 = vpack.c.b16 %v1366, %v1362
    %v1659 = vpack.c.b16 %v1367, %v1363
    %v1660 = vpack.c.b16 %v1368, %v1364
    %v1661 = vpack.c.b16 %v1369, %v1365
    %v1662 = vpack.c.b16 %v1374, %v1370
    %v1663 = vpack.c.b16 %v1375, %v1371
    %v1664 = vpack.c.b16 %v1376, %v1372
    %v1665 = vpack.c.b16 %v1377, %v1373
    %1954 = vmatprep.subr.bf16.mxu0 %v1379
    %1955 = vmatpush1.bf16.msra.mxu0 %v1378
    %1956 = vmatprep.subr.bf16.mxu0 %v1383
    %1957 = vmatpush1.bf16.msra.mxu0 %v1382
    %1958 = vmatprep.subr.bf16.mxu0 %v1387
    %1959 = vmatpush1.bf16.msra.mxu0 %v1386
    %1960 = vmatprep.subr.bf16.mxu0 %v1391
    %1961 = vmatpush1.bf16.msra.mxu0 %v1390
    %1962 = vmatprep.subr.bf16.mxu0 %v1395
    %1963 = vmatpush1.bf16.msra.mxu0 %v1394
    %1964 = vmatprep.subr.bf16.mxu0 %v1399
    %1965 = vmatpush1.bf16.msra.mxu0 %v1398
    %1966 = vmatprep.subr.bf16.mxu0 %v1403
    %1967 = vmatpush1.bf16.msra.mxu0 %v1402
    %1968 = vmatprep.subr.bf16.mxu0 %v1407
    %1969 = vmatpush1.bf16.msra.mxu0 %v1406
    %1970 = vmatprep.subr.bf16.mxu0 %v1411
    %1971 = vmatpush1.bf16.msra.mxu0 %v1410
    %1972 = vmatprep.subr.bf16.mxu0 %v1415
    %1973 = vmatpush1.bf16.msra.mxu0 %v1414
    %1974 = vmatprep.subr.bf16.mxu0 %v1419
    %1975 = vmatpush1.bf16.msra.mxu0 %v1418
    %1976 = vmatprep.subr.bf16.mxu0 %v1423
    %1977 = vmatpush1.bf16.msra.mxu0 %v1422
    %1978 = vmatprep.subr.bf16.mxu0 %v1427
    %1979 = vmatpush1.bf16.msra.mxu0 %v1426
    %1980 = vmatprep.subr.bf16.mxu0 %v1431
    %1981 = vmatpush1.bf16.msra.mxu0 %v1430
    %1982 = vmatprep.subr.bf16.mxu0 %v1435
    %1983 = vmatpush1.bf16.msra.mxu0 %v1434
    %1984 = vmatprep.subr.bf16.mxu0 %v1439
    %1985 = vmatpush1.bf16.msra.mxu0 %v1438
    %1986 = vmatprep.mubr.bf16.mxu0 %v497
    %1987 = vmatmul.mubr.bf16.gmra.mrb[0].mxu0 %v496
    %v1988 = vpop.f32.mrb[0].mxu0
    %v1989 = vadd.f32 %v451, %v1988
    %v1990 = vpop.f32.mrb[0].mxu0
    %v1991 = vadd.f32 %v455, %v1990
    %v1992 = vpop.f32.mrb[0].mxu0
    %v1993 = vadd.f32 %v451, %v1992
    %v1994 = vpop.f32.mrb[0].mxu0
    %v1995 = vadd.f32 %v455, %v1994
    %1996 = vdwg.mxu0
    %1997 = vmatprep.subr.bf16.mxu0 %v1443
    %1998 = vmatpush1.bf16.msra.mxu0 %v1442
    %1999 = vmatprep.subr.bf16.mxu0 %v1447
    %2000 = vmatpush1.bf16.msra.mxu0 %v1446
    %2001 = vmatprep.subr.bf16.mxu0 %v1451
    %2002 = vmatpush1.bf16.msra.mxu0 %v1450
    %2003 = vmatprep.subr.bf16.mxu0 %v1455
    %2004 = vmatpush1.bf16.msra.mxu0 %v1454
    %2005 = vmatprep.subr.bf16.mxu0 %v1459
    %2006 = vmatpush1.bf16.msra.mxu0 %v1458
    %2007 = vmatprep.subr.bf16.mxu0 %v1463
    %2008 = vmatpush1.bf16.msra.mxu0 %v1462
    %2009 = vmatprep.subr.bf16.mxu0 %v1467
    %2010 = vmatpush1.bf16.msra.mxu0 %v1466
    %2011 = vmatprep.subr.bf16.mxu0 %v1471
    %2012 = vmatpush1.bf16.msra.mxu0 %v1470
    %2013 = vmatprep.subr.bf16.mxu0 %v1475
    %2014 = vmatpush1.bf16.msra.mxu0 %v1474
    %2015 = vmatprep.subr.bf16.mxu0 %v1479
    %2016 = vmatpush1.bf16.msra.mxu0 %v1478
    %2017 = vmatprep.subr.bf16.mxu0 %v1483
    %2018 = vmatpush1.bf16.msra.mxu0 %v1482
    %2019 = vmatprep.subr.bf16.mxu0 %v1487
    %2020 = vmatpush1.bf16.msra.mxu0 %v1486
    %2021 = vmatprep.subr.bf16.mxu0 %v1491
    %2022 = vmatpush1.bf16.msra.mxu0 %v1490
    %2023 = vmatprep.subr.bf16.mxu0 %v1495
    %2024 = vmatpush1.bf16.msra.mxu0 %v1494
    %2025 = vmatprep.subr.bf16.mxu0 %v1499
    %2026 = vmatpush1.bf16.msra.mxu0 %v1498
    %2027 = vmatprep.subr.bf16.mxu0 %v1503
    %2028 = vmatpush1.bf16.msra.mxu0 %v1502
    %2029 = vmatprep.mubr.bf16.mxu0 %v499
    %2030 = vmatmul.mubr.bf16.gmra.mrb[0].mxu0 %v498
    %v2031 = vpop.f32.mrb[0].mxu0
    %v2032 = vadd.f32 %v1989, %v2031
    %v2033 = vpop.f32.mrb[0].mxu0
    %v2034 = vadd.f32 %v1991, %v2033
    %v2035 = vpop.f32.mrb[0].mxu0
    %v2036 = vadd.f32 %v1993, %v2035
    %v2037 = vpop.f32.mrb[0].mxu0
    %v2038 = vadd.f32 %v1995, %v2037
    %2039 = vdwg.mxu0
    %2040 = vmatprep.subr.bf16.mxu0 %v1507
    %2041 = vmatpush1.bf16.msra.mxu0 %v1506
    %2042 = vmatprep.subr.bf16.mxu0 %v1511
    %2043 = vmatpush1.bf16.msra.mxu0 %v1510
    %2044 = vmatprep.subr.bf16.mxu0 %v1515
    %2045 = vmatpush1.bf16.msra.mxu0 %v1514
    %2046 = vmatprep.subr.bf16.mxu0 %v1519
    %2047 = vmatpush1.bf16.msra.mxu0 %v1518
    %2048 = vmatprep.subr.bf16.mxu0 %v1523
    %2049 = vmatpush1.bf16.msra.mxu0 %v1522
    %2050 = vmatprep.subr.bf16.mxu0 %v1527
    %2051 = vmatpush1.bf16.msra.mxu0 %v1526
    %2052 = vmatprep.subr.bf16.mxu0 %v1531
    %2053 = vmatpush1.bf16.msra.mxu0 %v1530
    %2054 = vmatprep.subr.bf16.mxu0 %v1535
    %2055 = vmatpush1.bf16.msra.mxu0 %v1534
    %2056 = vmatprep.subr.bf16.mxu0 %v1539
    %2057 = vmatpush1.bf16.msra.mxu0 %v1538
    %2058 = vmatprep.subr.bf16.mxu0 %v1543
    %2059 = vmatpush1.bf16.msra.mxu0 %v1542
    %2060 = vmatprep.subr.bf16.mxu0 %v1547
    %2061 = vmatpush1.bf16.msra.mxu0 %v1546
    %2062 = vmatprep.subr.bf16.mxu0 %v1551
    %2063 = vmatpush1.bf16.msra.mxu0 %v1550
    %2064 = vmatprep.subr.bf16.mxu0 %v1555
    %2065 = vmatpush1.bf16.msra.mxu0 %v1554
    %2066 = vmatprep.subr.bf16.mxu0 %v1559
    %2067 = vmatpush1.bf16.msra.mxu0 %v1558
    %2068 = vmatprep.subr.bf16.mxu0 %v1563
    %2069 = vmatpush1.bf16.msra.mxu0 %v1562
    %2070 = vmatprep.subr.bf16.mxu0 %v1567
    %2071 = vmatpush1.bf16.msra.mxu0 %v1566
    %2072 = vmatprep.mubr.bf16.mxu0 %v501
    %2073 = vmatmul.mubr.bf16.gmra.mrb[0].mxu0 %v500
    %v2074 = vpop.f32.mrb[0].mxu0
    %v2075 = vadd.f32 %v2032, %v2074
    %v2076 = vpop.f32.mrb[0].mxu0
    %v2077 = vadd.f32 %v2034, %v2076
    %v2078 = vpop.f32.mrb[0].mxu0
    %v2079 = vadd.f32 %v2036, %v2078
    %v2080 = vpop.f32.mrb[0].mxu0
    %v2081 = vadd.f32 %v2038, %v2080
    %2082 = vdwg.mxu0
    %2083 = vmatprep.subr.bf16.mxu0 %v1571
    %2084 = vmatpush1.bf16.msra.mxu0 %v1570
    %2085 = vmatprep.subr.bf16.mxu0 %v1575
    %2086 = vmatpush1.bf16.msra.mxu0 %v1574
    %2087 = vmatprep.subr.bf16.mxu0 %v1579
    %2088 = vmatpush1.bf16.msra.mxu0 %v1578
    %2089 = vmatprep.subr.bf16.mxu0 %v1583
    %2090 = vmatpush1.bf16.msra.mxu0 %v1582
    %2091 = vmatprep.subr.bf16.mxu0 %v1587
    %2092 = vmatpush1.bf16.msra.mxu0 %v1586
    %2093 = vmatprep.subr.bf16.mxu0 %v1591
    %2094 = vmatpush1.bf16.msra.mxu0 %v1590
    %2095 = vmatprep.subr.bf16.mxu0 %v1595
    %2096 = vmatpush1.bf16.msra.mxu0 %v1594
    %2097 = vmatprep.subr.bf16.mxu0 %v1599
    %2098 = vmatpush1.bf16.msra.mxu0 %v1598
    %2099 = vmatprep.subr.bf16.mxu0 %v1603
    %2100 = vmatpush1.bf16.msra.mxu0 %v1602
    %2101 = vmatprep.subr.bf16.mxu0 %v1607
    %2102 = vmatpush1.bf16.msra.mxu0 %v1606
    %2103 = vmatprep.subr.bf16.mxu0 %v1611
    %2104 = vmatpush1.bf16.msra.mxu0 %v1610
    %2105 = vmatprep.subr.bf16.mxu0 %v1615
    %2106 = vmatpush1.bf16.msra.mxu0 %v1614
    %2107 = vmatprep.subr.bf16.mxu0 %v1619
    %2108 = vmatpush1.bf16.msra.mxu0 %v1618
    %2109 = vmatprep.subr.bf16.mxu0 %v1623
    %2110 = vmatpush1.bf16.msra.mxu0 %v1622
    %2111 = vmatprep.subr.bf16.mxu0 %v1627
    %2112 = vmatpush1.bf16.msra.mxu0 %v1626
    %2113 = vmatprep.subr.bf16.mxu0 %v1631
    %2114 = vmatpush1.bf16.msra.mxu0 %v1630
    %2115 = vmatprep.mubr.bf16.mxu0 %v503
    %2116 = vmatmul.mubr.bf16.gmra.mrb[0].mxu0 %v502
    %v2117 = vpop.f32.mrb[0].mxu0
    %v2118 = vadd.f32 %v2075, %v2117
    %v2119 = vpop.f32.mrb[0].mxu0
    %v2120 = vadd.f32 %v2077, %v2119
    %v2121 = vpop.f32.mrb[0].mxu0
    %v2122 = vadd.f32 %v2079, %v2121
    %v2123 = vpop.f32.mrb[0].mxu0
    %v2124 = vadd.f32 %v2081, %v2123
    %2125 = vdwg.mxu0
    %2126 = vmatprep.subr.bf16.mxu0 %v1635
    %2127 = vmatpush1.bf16.msra.mxu0 %v1634
    %2128 = vmatprep.subr.bf16.mxu0 %v1639
    %2129 = vmatpush1.bf16.msra.mxu0 %v1638
    %2130 = vmatprep.subr.bf16.mxu0 %v1643
    %2131 = vmatpush1.bf16.msra.mxu0 %v1642
    %2132 = vmatprep.subr.bf16.mxu0 %v1647
    %2133 = vmatpush1.bf16.msra.mxu0 %v1646
    %2134 = vmatprep.subr.bf16.mxu0 %v1651
    %2135 = vmatpush1.bf16.msra.mxu0 %v1650
    %2136 = vmatprep.subr.bf16.mxu0 %v1655
    %2137 = vmatpush1.bf16.msra.mxu0 %v1654
    %2138 = vmatprep.subr.bf16.mxu0 %v1659
    %2139 = vmatpush1.bf16.msra.mxu0 %v1658
    %2140 = vmatprep.subr.bf16.mxu0 %v1663
    %2141 = vmatpush1.bf16.msra.mxu0 %v1662
    %2142 = vmatprep.subr.bf16.mxu0 0
    %2143 = vmatpush1.bf16.msra.mxu0 0
    %2144 = vmatprep.subr.bf16.mxu0 0
    %2145 = vmatpush1.bf16.msra.mxu0 0
    %2146 = vmatprep.subr.bf16.mxu0 0
    %2147 = vmatpush1.bf16.msra.mxu0 0
    %2148 = vmatprep.subr.bf16.mxu0 0
    %2149 = vmatpush1.bf16.msra.mxu0 0
    %2150 = vmatprep.subr.bf16.mxu0 0
    %2151 = vmatpush1.bf16.msra.mxu0 0
    %2152 = vmatprep.subr.bf16.mxu0 0
    %2153 = vmatpush1.bf16.msra.mxu0 0
    %2154 = vmatprep.subr.bf16.mxu0 0
    %2155 = vmatpush1.bf16.msra.mxu0 0
    %2156 = vmatprep.subr.bf16.mxu0 0
    %2157 = vmatpush1.bf16.msra.mxu0 0
    %2158 = vmatprep.mubr.bf16.mxu0 0
    %2159 = vmatmul.mubr.bf16.gmra.mrb[0].mxu0 %v504
    %v2160 = vpop.f32.mrb[0].mxu0
    %v2161 = vadd.f32 %v2118, %v2160
    %v2162 = vpop.f32.mrb[0].mxu0
    %v2163 = vadd.f32 %v2120, %v2162
    %v2164 = vpop.f32.mrb[0].mxu0
    %v2165 = vadd.f32 %v2122, %v2164
    %v2166 = vpop.f32.mrb[0].mxu0
    %v2167 = vadd.f32 %v2124, %v2166
    %2168 = vdwg.mxu0
    %2169 = vmatprep.subr.bf16.mxu0 %v1381
    %2170 = vmatpush1.bf16.msra.mxu0 %v1380
    %2171 = vmatprep.subr.bf16.mxu0 %v1385
    %2172 = vmatpush1.bf16.msra.mxu0 %v1384
    %2173 = vmatprep.subr.bf16.mxu0 %v1389
    %2174 = vmatpush1.bf16.msra.mxu0 %v1388
    %2175 = vmatprep.subr.bf16.mxu0 %v1393
    %2176 = vmatpush1.bf16.msra.mxu0 %v1392
    %2177 = vmatprep.subr.bf16.mxu0 %v1397
    %2178 = vmatpush1.bf16.msra.mxu0 %v1396
    %2179 = vmatprep.subr.bf16.mxu0 %v1401
    %2180 = vmatpush1.bf16.msra.mxu0 %v1400
    %2181 = vmatprep.subr.bf16.mxu0 %v1405
    %2182 = vmatpush1.bf16.msra.mxu0 %v1404
    %2183 = vmatprep.subr.bf16.mxu0 %v1409
    %2184 = vmatpush1.bf16.msra.mxu0 %v1408
    %2185 = vmatprep.subr.bf16.mxu0 %v1413
    %2186 = vmatpush1.bf16.msra.mxu0 %v1412
    %2187 = vmatprep.subr.bf16.mxu0 %v1417
    %2188 = vmatpush1.bf16.msra.mxu0 %v1416
    %2189 = vmatprep.subr.bf16.mxu0 %v1421
    %2190 = vmatpush1.bf16.msra.mxu0 %v1420
    %2191 = vmatprep.subr.bf16.mxu0 %v1425
    %2192 = vmatpush1.bf16.msra.mxu0 %v1424
    %2193 = vmatprep.subr.bf16.mxu0 %v1429
    %2194 = vmatpush1.bf16.msra.mxu0 %v1428
    %2195 = vmatprep.subr.bf16.mxu0 %v1433
    %2196 = vmatpush1.bf16.msra.mxu0 %v1432
    %2197 = vmatprep.subr.bf16.mxu0 %v1437
    %2198 = vmatpush1.bf16.msra.mxu0 %v1436
    %2199 = vmatprep.subr.bf16.mxu0 %v1441
    %2200 = vmatpush1.bf16.msra.mxu0 %v1440
    %2201 = vmatprep.mubr.bf16.mxu0 %v497
    %2202 = vmatmul.mubr.bf16.gmra.mrb[0].mxu0 %v496
    %v2203 = vpop.f32.mrb[0].mxu0
    %v2204 = vadd.f32 %v459, %v2203
    %v2205 = vpop.f32.mrb[0].mxu0
    %v2206 = vadd.f32 %v463, %v2205
    %v2207 = vpop.f32.mrb[0].mxu0
    %v2208 = vadd.f32 %v459, %v2207
    %v2209 = vpop.f32.mrb[0].mxu0
    %v2210 = vadd.f32 %v463, %v2209
    %2211 = vdwg.mxu0
    %2212 = vmatprep.subr.bf16.mxu0 %v1445
    %2213 = vmatpush1.bf16.msra.mxu0 %v1444
    %2214 = vmatprep.subr.bf16.mxu0 %v1449
    %2215 = vmatpush1.bf16.msra.mxu0 %v1448
    %2216 = vmatprep.subr.bf16.mxu0 %v1453
    %2217 = vmatpush1.bf16.msra.mxu0 %v1452
    %2218 = vmatprep.subr.bf16.mxu0 %v1457
    %2219 = vmatpush1.bf16.msra.mxu0 %v1456
    %2220 = vmatprep.subr.bf16.mxu0 %v1461
    %2221 = vmatpush1.bf16.msra.mxu0 %v1460
    %2222 = vmatprep.subr.bf16.mxu0 %v1465
    %2223 = vmatpush1.bf16.msra.mxu0 %v1464
    %2224 = vmatprep.subr.bf16.mxu0 %v1469
    %2225 = vmatpush1.bf16.msra.mxu0 %v1468
    %2226 = vmatprep.subr.bf16.mxu0 %v1473
    %2227 = vmatpush1.bf16.msra.mxu0 %v1472
    %2228 = vmatprep.subr.bf16.mxu0 %v1477
    %2229 = vmatpush1.bf16.msra.mxu0 %v1476
    %2230 = vmatprep.subr.bf16.mxu0 %v1481
    %2231 = vmatpush1.bf16.msra.mxu0 %v1480
    %2232 = vmatprep.subr.bf16.mxu0 %v1485
    %2233 = vmatpush1.bf16.msra.mxu0 %v1484
    %2234 = vmatprep.subr.bf16.mxu0 %v1489
    %2235 = vmatpush1.bf16.msra.mxu0 %v1488
    %2236 = vmatprep.subr.bf16.mxu0 %v1493
    %2237 = vmatpush1.bf16.msra.mxu0 %v1492
    %2238 = vmatprep.subr.bf16.mxu0 %v1497
    %2239 = vmatpush1.bf16.msra.mxu0 %v1496
    %2240 = vmatprep.subr.bf16.mxu0 %v1501
    %2241 = vmatpush1.bf16.msra.mxu0 %v1500
    %2242 = vmatprep.subr.bf16.mxu0 %v1505
    %2243 = vmatpush1.bf16.msra.mxu0 %v1504
    %2244 = vmatprep.mubr.bf16.mxu0 %v499
    %2245 = vmatmul.mubr.bf16.gmra.mrb[0].mxu0 %v498
    %v2246 = vpop.f32.mrb[0].mxu0
    %v2247 = vadd.f32 %v2204, %v2246
    %v2248 = vpop.f32.mrb[0].mxu0
    %v2249 = vadd.f32 %v2206, %v2248
    %v2250 = vpop.f32.mrb[0].mxu0
    %v2251 = vadd.f32 %v2208, %v2250
    %v2252 = vpop.f32.mrb[0].mxu0
    %v2253 = vadd.f32 %v2210, %v2252
    %2254 = vdwg.mxu0
    %2255 = vmatprep.subr.bf16.mxu0 %v1509
    %2256 = vmatpush1.bf16.msra.mxu0 %v1508
    %2257 = vmatprep.subr.bf16.mxu0 %v1513
    %2258 = vmatpush1.bf16.msra.mxu0 %v1512
    %2259 = vmatprep.subr.bf16.mxu0 %v1517
    %2260 = vmatpush1.bf16.msra.mxu0 %v1516
    %2261 = vmatprep.subr.bf16.mxu0 %v1521
    %2262 = vmatpush1.bf16.msra.mxu0 %v1520
    %2263 = vmatprep.subr.bf16.mxu0 %v1525
    %2264 = vmatpush1.bf16.msra.mxu0 %v1524
    %2265 = vmatprep.subr.bf16.mxu0 %v1529
    %2266 = vmatpush1.bf16.msra.mxu0 %v1528
    %2267 = vmatprep.subr.bf16.mxu0 %v1533
    %2268 = vmatpush1.bf16.msra.mxu0 %v1532
    %2269 = vmatprep.subr.bf16.mxu0 %v1537
    %2270 = vmatpush1.bf16.msra.mxu0 %v1536
    %2271 = vmatprep.subr.bf16.mxu0 %v1541
    %2272 = vmatpush1.bf16.msra.mxu0 %v1540
    %2273 = vmatprep.subr.bf16.mxu0 %v1545
    %2274 = vmatpush1.bf16.msra.mxu0 %v1544
    %2275 = vmatprep.subr.bf16.mxu0 %v1549
    %2276 = vmatpush1.bf16.msra.mxu0 %v1548
    %2277 = vmatprep.subr.bf16.mxu0 %v1553
    %2278 = vmatpush1.bf16.msra.mxu0 %v1552
    %2279 = vmatprep.subr.bf16.mxu0 %v1557
    %2280 = vmatpush1.bf16.msra.mxu0 %v1556
    %2281 = vmatprep.subr.bf16.mxu0 %v1561
    %2282 = vmatpush1.bf16.msra.mxu0 %v1560
    %2283 = vmatprep.subr.bf16.mxu0 %v1565
    %2284 = vmatpush1.bf16.msra.mxu0 %v1564
    %2285 = vmatprep.subr.bf16.mxu0 %v1569
    %2286 = vmatpush1.bf16.msra.mxu0 %v1568
    %2287 = vmatprep.mubr.bf16.mxu0 %v501
    %2288 = vmatmul.mubr.bf16.gmra.mrb[0].mxu0 %v500
    %v2289 = vpop.f32.mrb[0].mxu0
    %v2290 = vadd.f32 %v2247, %v2289
    %v2291 = vpop.f32.mrb[0].mxu0
    %v2292 = vadd.f32 %v2249, %v2291
    %v2293 = vpop.f32.mrb[0].mxu0
    %v2294 = vadd.f32 %v2251, %v2293
    %v2295 = vpop.f32.mrb[0].mxu0
    %v2296 = vadd.f32 %v2253, %v2295
    %2297 = vdwg.mxu0
    %2298 = vmatprep.subr.bf16.mxu0 %v1573
    %2299 = vmatpush1.bf16.msra.mxu0 %v1572
    %2300 = vmatprep.subr.bf16.mxu0 %v1577
    %2301 = vmatpush1.bf16.msra.mxu0 %v1576
    %2302 = vmatprep.subr.bf16.mxu0 %v1581
    %2303 = vmatpush1.bf16.msra.mxu0 %v1580
    %2304 = vmatprep.subr.bf16.mxu0 %v1585
    %2305 = vmatpush1.bf16.msra.mxu0 %v1584
    %2306 = vmatprep.subr.bf16.mxu0 %v1589
    %2307 = vmatpush1.bf16.msra.mxu0 %v1588
    %2308 = vmatprep.subr.bf16.mxu0 %v1593
    %2309 = vmatpush1.bf16.msra.mxu0 %v1592
    %2310 = vmatprep.subr.bf16.mxu0 %v1597
    %2311 = vmatpush1.bf16.msra.mxu0 %v1596
    %2312 = vmatprep.subr.bf16.mxu0 %v1601
    %2313 = vmatpush1.bf16.msra.mxu0 %v1600
    %2314 = vmatprep.subr.bf16.mxu0 %v1605
    %2315 = vmatpush1.bf16.msra.mxu0 %v1604
    %2316 = vmatprep.subr.bf16.mxu0 %v1609
    %2317 = vmatpush1.bf16.msra.mxu0 %v1608
    %2318 = vmatprep.subr.bf16.mxu0 %v1613
    %2319 = vmatpush1.bf16.msra.mxu0 %v1612
    %2320 = vmatprep.subr.bf16.mxu0 %v1617
    %2321 = vmatpush1.bf16.msra.mxu0 %v1616
    %2322 = vmatprep.subr.bf16.mxu0 %v1621
    %2323 = vmatpush1.bf16.msra.mxu0 %v1620
    %2324 = vmatprep.subr.bf16.mxu0 %v1625
    %2325 = vmatpush1.bf16.msra.mxu0 %v1624
    %2326 = vmatprep.subr.bf16.mxu0 %v1629
    %2327 = vmatpush1.bf16.msra.mxu0 %v1628
    %2328 = vmatprep.subr.bf16.mxu0 %v1633
    %2329 = vmatpush1.bf16.msra.mxu0 %v1632
    %2330 = vmatprep.mubr.bf16.mxu0 %v503
    %2331 = vmatmul.mubr.bf16.gmra.mrb[0].mxu0 %v502
    %v2332 = vpop.f32.mrb[0].mxu0
    %v2333 = vadd.f32 %v2290, %v2332
    %v2334 = vpop.f32.mrb[0].mxu0
    %v2335 = vadd.f32 %v2292, %v2334
    %v2336 = vpop.f32.mrb[0].mxu0
    %v2337 = vadd.f32 %v2294, %v2336
    %v2338 = vpop.f32.mrb[0].mxu0
    %v2339 = vadd.f32 %v2296, %v2338
    %2340 = vdwg.mxu0
    %2341 = vmatprep.subr.bf16.mxu0 %v1637
    %2342 = vmatpush1.bf16.msra.mxu0 %v1636
    %2343 = vmatprep.subr.bf16.mxu0 %v1641
    %2344 = vmatpush1.bf16.msra.mxu0 %v1640
    %2345 = vmatprep.subr.bf16.mxu0 %v1645
    %2346 = vmatpush1.bf16.msra.mxu0 %v1644
    %2347 = vmatprep.subr.bf16.mxu0 %v1649
    %2348 = vmatpush1.bf16.msra.mxu0 %v1648
    %2349 = vmatprep.subr.bf16.mxu0 %v1653
    %2350 = vmatpush1.bf16.msra.mxu0 %v1652
    %2351 = vmatprep.subr.bf16.mxu0 %v1657
    %2352 = vmatpush1.bf16.msra.mxu0 %v1656
    %2353 = vmatprep.subr.bf16.mxu0 %v1661
    %2354 = vmatpush1.bf16.msra.mxu0 %v1660
    %2355 = vmatprep.subr.bf16.mxu0 %v1665
    %2356 = vmatpush1.bf16.msra.mxu0 %v1664
    %2357 = vmatprep.subr.bf16.mxu0 0
    %2358 = vmatpush1.bf16.msra.mxu0 0
    %2359 = vmatprep.subr.bf16.mxu0 0
    %2360 = vmatpush1.bf16.msra.mxu0 0
    %2361 = vmatprep.subr.bf16.mxu0 0
    %2362 = vmatpush1.bf16.msra.mxu0 0
    %2363 = vmatprep.subr.bf16.mxu0 0
    %2364 = vmatpush1.bf16.msra.mxu0 0
    %2365 = vmatprep.subr.bf16.mxu0 0
    %2366 = vmatpush1.bf16.msra.mxu0 0
    %2367 = vmatprep.subr.bf16.mxu0 0
    %2368 = vmatpush1.bf16.msra.mxu0 0
    %2369 = vmatprep.subr.bf16.mxu0 0
    %2370 = vmatpush1.bf16.msra.mxu0 0
    %2371 = vmatprep.subr.bf16.mxu0 0
    %2372 = vmatpush1.bf16.msra.mxu0 0
    %2373 = vmatprep.mubr.bf16.mxu0 0
    %2374 = vmatmul.mubr.bf16.gmra.mrb[0].mxu0 %v504
    %v2375 = vpop.f32.mrb[0].mxu0
    %v2376 = vadd.f32 %v2333, %v2375
    %v2377 = vpop.f32.mrb[0].mxu0
    %v2378 = vadd.f32 %v2335, %v2377
    %v2379 = vpop.f32.mrb[0].mxu0
    %v2380 = vadd.f32 %v2337, %v2379
    %v2381 = vpop.f32.mrb[0].mxu0
    %v2382 = vadd.f32 %v2339, %v2381
    %2383 = vdwg.mxu0
    %v2384 = vmax.f32 %v2161, 0.0
    %v2385 = vmax.f32 %v2163, 0.0
    %v2386 = vmax.f32 %v2376, 0.0
    %v2387 = vmax.f32 %v2378, 0.0
    %v2388 = vmax.f32 %v2165, 0.0
    %v2389 = vmax.f32 %v2167, 0.0
    %v2390 = vmax.f32 %v2380, 0.0
    %v2391 = vmax.f32 %v2382, 0.0
    %v2392 = vpack.c.bf16 %v2388, %v2384
    %v2393 = vpack.c.bf16 %v2389, %v2385
    %v2394 = vpack.c.bf16 %v2390, %v2386
    %v2395 = vpack.c.bf16 %v2391, %v2387
    %v2396 = vld [vmem:[#allocation8] sm:$0xff]
    %v2397 = vld [vmem:[#allocation8 + $0x8] sm:$0xff]
    %v2398 = vld [vmem:[#allocation8 + $0x10] sm:$0xff]
    %v2399 = vld [vmem:[#allocation8 + $0x18] sm:$0xff]
    %v2400 = vld [vmem:[#allocation8 + $0x20] sm:$0xff]
    %v2401 = vld [vmem:[#allocation8 + $0x28] sm:$0xff]
    %v2402 = vld [vmem:[#allocation8 + $0x30] sm:$0xff]
    %v2403 = vld [vmem:[#allocation8 + $0x38] sm:$0xff]
    %v2404 = vld [vmem:[#allocation8 + $0x40] sm:$0xff]
    %v2405 = vld [vmem:[#allocation8 + $0x48] sm:$0xff]
    %v2406 = vld [vmem:[#allocation8 + $0x50] sm:$0xff]
    %v2407 = vld [vmem:[#allocation8 + $0x58] sm:$0xff]
    %v2408 = vld [vmem:[#allocation8 + $0x60] sm:$0xff]
    %v2409 = vld [vmem:[#allocation8 + $0x68] sm:$0xff]
    %v2410 = vld [vmem:[#allocation8 + $0x70] sm:$0xff]
    %v2411 = vld [vmem:[#allocation8 + $0x78] sm:$0xff]
    %v2412 = vld [vmem:[#allocation8 + $0x80] sm:$0xff]
    %v2413 = vld [vmem:[#allocation8 + $0x88] sm:$0xff]
    %v2414 = vld [vmem:[#allocation8 + $0x90] sm:$0xff]
    %v2415 = vld [vmem:[#allocation8 + $0x98] sm:$0xff]
    %v2416 = vld [vmem:[#allocation8 + $0xa0] sm:$0xff]
    %v2417 = vld [vmem:[#allocation8 + $0xa8] sm:$0xff]
    %v2418 = vld [vmem:[#allocation8 + $0xb0] sm:$0xff]
    %v2419 = vld [vmem:[#allocation8 + $0xb8] sm:$0xff]
    %v2420 = vld [vmem:[#allocation8 + $0xc0] sm:$0xff]
    %v2421 = vld [vmem:[#allocation8 + $0xc8] sm:$0xff]
    %v2422 = vld [vmem:[#allocation8 + $0xd0] sm:$0xff]
    %v2423 = vld [vmem:[#allocation8 + $0xd8] sm:$0xff]
    %v2424 = vld [vmem:[#allocation8 + $0xe0] sm:$0xff]
    %v2425 = vld [vmem:[#allocation8 + $0xe8] sm:$0xff]
    %v2426 = vld [vmem:[#allocation8 + $0xf0] sm:$0xff]
    %v2427 = vld [vmem:[#allocation8 + $0xf8] sm:$0xff]
    %v2428 = vld [vmem:[#allocation8 + $0x100] sm:$0xff]
    %v2429 = vld [vmem:[#allocation8 + $0x108] sm:$0xff]
    %v2430 = vld [vmem:[#allocation8 + $0x110] sm:$0xff]
    %v2431 = vld [vmem:[#allocation8 + $0x118] sm:$0xff]
    %v2432 = vld [vmem:[#allocation8 + $0x120] sm:$0xff]
    %v2433 = vld [vmem:[#allocation8 + $0x128] sm:$0xff]
    %v2434 = vld [vmem:[#allocation8 + $0x130] sm:$0xff]
    %v2435 = vld [vmem:[#allocation8 + $0x138] sm:$0xff]
    %v2436 = vld [vmem:[#allocation8 + $0x140] sm:$0xff]
    %v2437 = vld [vmem:[#allocation8 + $0x148] sm:$0xff]
    %v2438 = vld [vmem:[#allocation8 + $0x150] sm:$0xff]
    %v2439 = vld [vmem:[#allocation8 + $0x158] sm:$0xff]
    %v2440 = vld [vmem:[#allocation8 + $0x160] sm:$0xff]
    %v2441 = vld [vmem:[#allocation8 + $0x168] sm:$0xff]
    %v2442 = vld [vmem:[#allocation8 + $0x170] sm:$0xff]
    %v2443 = vld [vmem:[#allocation8 + $0x178] sm:$0xff]
    %v2444 = vld [vmem:[#allocation8 + $0x180] sm:$0xff]
    %v2445 = vld [vmem:[#allocation8 + $0x188] sm:$0xff]
    %v2446 = vld [vmem:[#allocation8 + $0x190] sm:$0xff]
    %v2447 = vld [vmem:[#allocation8 + $0x198] sm:$0xff]
    %v2448 = vld [vmem:[#allocation8 + $0x1a0] sm:$0xff]
    %v2449 = vld [vmem:[#allocation8 + $0x1a8] sm:$0xff]
    %v2450 = vld [vmem:[#allocation8 + $0x1b0] sm:$0xff]
    %v2451 = vld [vmem:[#allocation8 + $0x1b8] sm:$0xff]
    %v2452 = vld [vmem:[#allocation8 + $0x1c0] sm:$0xff]
    %v2453 = vld [vmem:[#allocation8 + $0x1c8] sm:$0xff]
    %v2454 = vld [vmem:[#allocation8 + $0x1d0] sm:$0xff]
    %v2455 = vld [vmem:[#allocation8 + $0x1d8] sm:$0xff]
    %v2456 = vld [vmem:[#allocation8 + $0x1e0] sm:$0xff]
    %v2457 = vld [vmem:[#allocation8 + $0x1e8] sm:$0xff]
    %v2458 = vld [vmem:[#allocation8 + $0x1f0] sm:$0xff]
    %v2459 = vld [vmem:[#allocation8 + $0x1f8] sm:$0xff]
    %v2460 = vld [vmem:[#allocation10] sm:$0x3]
    %v2462 = vlaneseq
    %v2463 = vshrl.u32 %v2462, 7
    %v2464 = vsub.s32 0, %v2463
    %v2465 = vrot.slane %v2460, %v2464
    %v2466 = vlaneseq
    %v2467 = vshrl.u32 %v2466, 7
    %v2468 = vsub.s32 1, %v2467
    %v2469 = vrot.slane %v2460, %v2468
    %v2536 = vunpack.c.l.b16 %v2396
    %v2537 = vunpack.c.h.b16 %v2396
    %v2538 = vunpack.c.l.b16 %v2397
    %v2539 = vunpack.c.h.b16 %v2397
    %v2540 = vunpack.c.l.b16 %v2398
    %v2541 = vunpack.c.h.b16 %v2398
    %v2542 = vunpack.c.l.b16 %v2399
    %v2543 = vunpack.c.h.b16 %v2399
    %v2544 = vunpack.c.l.b16 %v2400
    %v2545 = vunpack.c.h.b16 %v2400
    %v2546 = vunpack.c.l.b16 %v2401
    %v2547 = vunpack.c.h.b16 %v2401
    %v2548 = vunpack.c.l.b16 %v2402
    %v2549 = vunpack.c.h.b16 %v2402
    %v2550 = vunpack.c.l.b16 %v2403
    %v2551 = vunpack.c.h.b16 %v2403
    %v2552 = vunpack.c.l.b16 %v2404
    %v2553 = vunpack.c.h.b16 %v2404
    %v2554 = vunpack.c.l.b16 %v2405
    %v2555 = vunpack.c.h.b16 %v2405
    %v2556 = vunpack.c.l.b16 %v2406
    %v2557 = vunpack.c.h.b16 %v2406
    %v2558 = vunpack.c.l.b16 %v2407
    %v2559 = vunpack.c.h.b16 %v2407
    %v2560 = vunpack.c.l.b16 %v2408
    %v2561 = vunpack.c.h.b16 %v2408
    %v2562 = vunpack.c.l.b16 %v2409
    %v2563 = vunpack.c.h.b16 %v2409
    %v2564 = vunpack.c.l.b16 %v2410
    %v2565 = vunpack.c.h.b16 %v2410
    %v2566 = vunpack.c.l.b16 %v2411
    %v2567 = vunpack.c.h.b16 %v2411
    %v2568 = vunpack.c.l.b16 %v2412
    %v2569 = vunpack.c.h.b16 %v2412
    %v2570 = vunpack.c.l.b16 %v2413
    %v2571 = vunpack.c.h.b16 %v2413
    %v2572 = vunpack.c.l.b16 %v2414
    %v2573 = vunpack.c.h.b16 %v2414
    %v2574 = vunpack.c.l.b16 %v2415
    %v2575 = vunpack.c.h.b16 %v2415
    %v2576 = vunpack.c.l.b16 %v2416
    %v2577 = vunpack.c.h.b16 %v2416
    %v2578 = vunpack.c.l.b16 %v2417
    %v2579 = vunpack.c.h.b16 %v2417
    %v2580 = vunpack.c.l.b16 %v2418
    %v2581 = vunpack.c.h.b16 %v2418
    %v2582 = vunpack.c.l.b16 %v2419
    %v2583 = vunpack.c.h.b16 %v2419
    %v2584 = vunpack.c.l.b16 %v2420
    %v2585 = vunpack.c.h.b16 %v2420
    %v2586 = vunpack.c.l.b16 %v2421
    %v2587 = vunpack.c.h.b16 %v2421
    %v2588 = vunpack.c.l.b16 %v2422
    %v2589 = vunpack.c.h.b16 %v2422
    %v2590 = vunpack.c.l.b16 %v2423
    %v2591 = vunpack.c.h.b16 %v2423
    %v2592 = vunpack.c.l.b16 %v2424
    %v2593 = vunpack.c.h.b16 %v2424
    %v2594 = vunpack.c.l.b16 %v2425
    %v2595 = vunpack.c.h.b16 %v2425
    %v2596 = vunpack.c.l.b16 %v2426
    %v2597 = vunpack.c.h.b16 %v2426
    %v2598 = vunpack.c.l.b16 %v2427
    %v2599 = vunpack.c.h.b16 %v2427
    %v2600 = vunpack.c.l.b16 %v2428
    %v2601 = vunpack.c.h.b16 %v2428
    %v2602 = vunpack.c.l.b16 %v2429
    %v2603 = vunpack.c.h.b16 %v2429
    %v2604 = vunpack.c.l.b16 %v2430
    %v2605 = vunpack.c.h.b16 %v2430
    %v2606 = vunpack.c.l.b16 %v2431
    %v2607 = vunpack.c.h.b16 %v2431
    %v2608 = vunpack.c.l.b16 %v2432
    %v2609 = vunpack.c.h.b16 %v2432
    %v2610 = vunpack.c.l.b16 %v2433
    %v2611 = vunpack.c.h.b16 %v2433
    %v2612 = vunpack.c.l.b16 %v2434
    %v2613 = vunpack.c.h.b16 %v2434
    %v2614 = vunpack.c.l.b16 %v2435
    %v2615 = vunpack.c.h.b16 %v2435
    %v2616 = vunpack.c.l.b16 %v2436
    %v2617 = vunpack.c.h.b16 %v2436
    %v2618 = vunpack.c.l.b16 %v2437
    %v2619 = vunpack.c.h.b16 %v2437
    %v2620 = vunpack.c.l.b16 %v2438
    %v2621 = vunpack.c.h.b16 %v2438
    %v2622 = vunpack.c.l.b16 %v2439
    %v2623 = vunpack.c.h.b16 %v2439
    %v2624 = vunpack.c.l.b16 %v2440
    %v2625 = vunpack.c.h.b16 %v2440
    %v2626 = vunpack.c.l.b16 %v2441
    %v2627 = vunpack.c.h.b16 %v2441
    %v2628 = vunpack.c.l.b16 %v2442
    %v2629 = vunpack.c.h.b16 %v2442
    %v2630 = vunpack.c.l.b16 %v2443
    %v2631 = vunpack.c.h.b16 %v2443
    %v2632 = vunpack.c.l.b16 %v2444
    %v2633 = vunpack.c.h.b16 %v2444
    %v2634 = vunpack.c.l.b16 %v2445
    %v2635 = vunpack.c.h.b16 %v2445
    %v2636 = vunpack.c.l.b16 %v2446
    %v2637 = vunpack.c.h.b16 %v2446
    %v2638 = vunpack.c.l.b16 %v2447
    %v2639 = vunpack.c.h.b16 %v2447
    %v2640 = vunpack.c.l.b16 %v2448
    %v2641 = vunpack.c.h.b16 %v2448
    %v2642 = vunpack.c.l.b16 %v2449
    %v2643 = vunpack.c.h.b16 %v2449
    %v2644 = vunpack.c.l.b16 %v2450
    %v2645 = vunpack.c.h.b16 %v2450
    %v2646 = vunpack.c.l.b16 %v2451
    %v2647 = vunpack.c.h.b16 %v2451
    %v2648 = vunpack.c.l.b16 %v2452
    %v2649 = vunpack.c.h.b16 %v2452
    %v2650 = vunpack.c.l.b16 %v2453
    %v2651 = vunpack.c.h.b16 %v2453
    %v2652 = vunpack.c.l.b16 %v2454
    %v2653 = vunpack.c.h.b16 %v2454
    %v2654 = vunpack.c.l.b16 %v2455
    %v2655 = vunpack.c.h.b16 %v2455
    %v2656 = vunpack.c.l.b16 %v2456
    %v2657 = vunpack.c.h.b16 %v2456
    %v2658 = vunpack.c.l.b16 %v2457
    %v2659 = vunpack.c.h.b16 %v2457
    %v2660 = vunpack.c.l.b16 %v2458
    %v2661 = vunpack.c.h.b16 %v2458
    %v2662 = vunpack.c.l.b16 %v2459
    %v2663 = vunpack.c.h.b16 %v2459
    %v2664 = vpack.c.b16 %v2538, %v2536
    %v2665 = vpack.c.b16 %v2539, %v2537
    %v2666 = vpack.c.b16 %v2542, %v2540
    %v2667 = vpack.c.b16 %v2543, %v2541
    %v2668 = vpack.c.b16 %v2546, %v2544
    %v2669 = vpack.c.b16 %v2547, %v2545
    %v2670 = vpack.c.b16 %v2550, %v2548
    %v2671 = vpack.c.b16 %v2551, %v2549
    %v2672 = vpack.c.b16 %v2554, %v2552
    %v2673 = vpack.c.b16 %v2555, %v2553
    %v2674 = vpack.c.b16 %v2558, %v2556
    %v2675 = vpack.c.b16 %v2559, %v2557
    %v2676 = vpack.c.b16 %v2562, %v2560
    %v2677 = vpack.c.b16 %v2563, %v2561
    %v2678 = vpack.c.b16 %v2566, %v2564
    %v2679 = vpack.c.b16 %v2567, %v2565
    %v2680 = vpack.c.b16 %v2570, %v2568
    %v2681 = vpack.c.b16 %v2571, %v2569
    %v2682 = vpack.c.b16 %v2574, %v2572
    %v2683 = vpack.c.b16 %v2575, %v2573
    %v2684 = vpack.c.b16 %v2578, %v2576
    %v2685 = vpack.c.b16 %v2579, %v2577
    %v2686 = vpack.c.b16 %v2582, %v2580
    %v2687 = vpack.c.b16 %v2583, %v2581
    %v2688 = vpack.c.b16 %v2586, %v2584
    %v2689 = vpack.c.b16 %v2587, %v2585
    %v2690 = vpack.c.b16 %v2590, %v2588
    %v2691 = vpack.c.b16 %v2591, %v2589
    %v2692 = vpack.c.b16 %v2594, %v2592
    %v2693 = vpack.c.b16 %v2595, %v2593
    %v2694 = vpack.c.b16 %v2598, %v2596
    %v2695 = vpack.c.b16 %v2599, %v2597
    %v2696 = vpack.c.b16 %v2602, %v2600
    %v2697 = vpack.c.b16 %v2603, %v2601
    %v2698 = vpack.c.b16 %v2606, %v2604
    %v2699 = vpack.c.b16 %v2607, %v2605
    %v2700 = vpack.c.b16 %v2610, %v2608
    %v2701 = vpack.c.b16 %v2611, %v2609
    %v2702 = vpack.c.b16 %v2614, %v2612
    %v2703 = vpack.c.b16 %v2615, %v2613
    %v2704 = vpack.c.b16 %v2618, %v2616
    %v2705 = vpack.c.b16 %v2619, %v2617
    %v2706 = vpack.c.b16 %v2622, %v2620
    %v2707 = vpack.c.b16 %v2623, %v2621
    %v2708 = vpack.c.b16 %v2626, %v2624
    %v2709 = vpack.c.b16 %v2627, %v2625
    %v2710 = vpack.c.b16 %v2630, %v2628
    %v2711 = vpack.c.b16 %v2631, %v2629
    %v2712 = vpack.c.b16 %v2634, %v2632
    %v2713 = vpack.c.b16 %v2635, %v2633
    %v2714 = vpack.c.b16 %v2638, %v2636
    %v2715 = vpack.c.b16 %v2639, %v2637
    %v2716 = vpack.c.b16 %v2642, %v2640
    %v2717 = vpack.c.b16 %v2643, %v2641
    %v2718 = vpack.c.b16 %v2646, %v2644
    %v2719 = vpack.c.b16 %v2647, %v2645
    %v2720 = vpack.c.b16 %v2650, %v2648
    %v2721 = vpack.c.b16 %v2651, %v2649
    %v2722 = vpack.c.b16 %v2654, %v2652
    %v2723 = vpack.c.b16 %v2655, %v2653
    %v2724 = vpack.c.b16 %v2658, %v2656
    %v2725 = vpack.c.b16 %v2659, %v2657
    %v2726 = vpack.c.b16 %v2662, %v2660
    %v2727 = vpack.c.b16 %v2663, %v2661
    %2792 = vmatprep.subr.bf16.mxu0 %v2665
    %2793 = vmatpush1.bf16.msra.mxu0 %v2664
    %2794 = vmatprep.subr.bf16.mxu0 %v2667
    %2795 = vmatpush1.bf16.msra.mxu0 %v2666
    %2796 = vmatprep.subr.bf16.mxu0 %v2669
    %2797 = vmatpush1.bf16.msra.mxu0 %v2668
    %2798 = vmatprep.subr.bf16.mxu0 %v2671
    %2799 = vmatpush1.bf16.msra.mxu0 %v2670
    %2800 = vmatprep.subr.bf16.mxu0 %v2673
    %2801 = vmatpush1.bf16.msra.mxu0 %v2672
    %2802 = vmatprep.subr.bf16.mxu0 %v2675
    %2803 = vmatpush1.bf16.msra.mxu0 %v2674
    %2804 = vmatprep.subr.bf16.mxu0 %v2677
    %2805 = vmatpush1.bf16.msra.mxu0 %v2676
    %2806 = vmatprep.subr.bf16.mxu0 %v2679
    %2807 = vmatpush1.bf16.msra.mxu0 %v2678
    %2808 = vmatprep.subr.bf16.mxu0 %v2681
    %2809 = vmatpush1.bf16.msra.mxu0 %v2680
    %2810 = vmatprep.subr.bf16.mxu0 %v2683
    %2811 = vmatpush1.bf16.msra.mxu0 %v2682
    %2812 = vmatprep.subr.bf16.mxu0 %v2685
    %2813 = vmatpush1.bf16.msra.mxu0 %v2684
    %2814 = vmatprep.subr.bf16.mxu0 %v2687
    %2815 = vmatpush1.bf16.msra.mxu0 %v2686
    %2816 = vmatprep.subr.bf16.mxu0 %v2689
    %2817 = vmatpush1.bf16.msra.mxu0 %v2688
    %2818 = vmatprep.subr.bf16.mxu0 %v2691
    %2819 = vmatpush1.bf16.msra.mxu0 %v2690
    %2820 = vmatprep.subr.bf16.mxu0 %v2693
    %2821 = vmatpush1.bf16.msra.mxu0 %v2692
    %2822 = vmatprep.subr.bf16.mxu0 %v2695
    %2823 = vmatpush1.bf16.msra.mxu0 %v2694
    %2824 = vmatprep.mubr.bf16.mxu0 %v2393
    %2825 = vmatmul.mubr.bf16.gmra.mrb[0].mxu0 %v2392
    %v2826 = vpop.f32.mrb[0].mxu0
    %v2827 = vadd.f32 %v2465, %v2826
    %v2828 = vpop.f32.mrb[0].mxu0
    %v2829 = vadd.f32 %v2469, %v2828
    %v2830 = vpop.f32.mrb[0].mxu0
    %v2831 = vadd.f32 %v2465, %v2830
    %v2832 = vpop.f32.mrb[0].mxu0
    %v2833 = vadd.f32 %v2469, %v2832
    %2834 = vdwg.mxu0
    %2835 = vmatprep.subr.bf16.mxu0 %v2697
    %2836 = vmatpush1.bf16.msra.mxu0 %v2696
    %2837 = vmatprep.subr.bf16.mxu0 %v2699
    %2838 = vmatpush1.bf16.msra.mxu0 %v2698
    %2839 = vmatprep.subr.bf16.mxu0 %v2701
    %2840 = vmatpush1.bf16.msra.mxu0 %v2700
    %2841 = vmatprep.subr.bf16.mxu0 %v2703
    %2842 = vmatpush1.bf16.msra.mxu0 %v2702
    %2843 = vmatprep.subr.bf16.mxu0 %v2705
    %2844 = vmatpush1.bf16.msra.mxu0 %v2704
    %2845 = vmatprep.subr.bf16.mxu0 %v2707
    %2846 = vmatpush1.bf16.msra.mxu0 %v2706
    %2847 = vmatprep.subr.bf16.mxu0 %v2709
    %2848 = vmatpush1.bf16.msra.mxu0 %v2708
    %2849 = vmatprep.subr.bf16.mxu0 %v2711
    %2850 = vmatpush1.bf16.msra.mxu0 %v2710
    %2851 = vmatprep.subr.bf16.mxu0 %v2713
    %2852 = vmatpush1.bf16.msra.mxu0 %v2712
    %2853 = vmatprep.subr.bf16.mxu0 %v2715
    %2854 = vmatpush1.bf16.msra.mxu0 %v2714
    %2855 = vmatprep.subr.bf16.mxu0 %v2717
    %2856 = vmatpush1.bf16.msra.mxu0 %v2716
    %2857 = vmatprep.subr.bf16.mxu0 %v2719
    %2858 = vmatpush1.bf16.msra.mxu0 %v2718
    %2859 = vmatprep.subr.bf16.mxu0 %v2721
    %2860 = vmatpush1.bf16.msra.mxu0 %v2720
    %2861 = vmatprep.subr.bf16.mxu0 %v2723
    %2862 = vmatpush1.bf16.msra.mxu0 %v2722
    %2863 = vmatprep.subr.bf16.mxu0 %v2725
    %2864 = vmatpush1.bf16.msra.mxu0 %v2724
    %2865 = vmatprep.subr.bf16.mxu0 %v2727
    %2866 = vmatpush1.bf16.msra.mxu0 %v2726
    %2867 = vmatprep.mubr.bf16.mxu0 %v2395
    %2868 = vmatmul.mubr.bf16.gmra.mrb[0].mxu0 %v2394
    %v2869 = vpop.f32.mrb[0].mxu0
    %v2870 = vadd.f32 %v2827, %v2869
    %v2871 = vpop.f32.mrb[0].mxu0
    %v2872 = vadd.f32 %v2829, %v2871
    %v2873 = vpop.f32.mrb[0].mxu0
    %v2874 = vadd.f32 %v2831, %v2873
    %v2875 = vpop.f32.mrb[0].mxu0
    %v2876 = vadd.f32 %v2833, %v2875
    %2877 = vdwg.mxu0
    %v2878 = vmax.f32 %v2870, 0.0
    %v2879 = vmax.f32 %v2872, 0.0
    %v2880 = vmax.f32 %v2874, 0.0
    %v2881 = vmax.f32 %v2876, 0.0
    %v2882 = vpack.c.bf16 %v2880, %v2878
    %v2883 = vpack.c.bf16 %v2881, %v2879
    %v2884 = vld [vmem:[#allocation11] sm:$0xf]
    %v2885 = vld [vmem:[#allocation11 + $0x4] sm:$0xf]
    %v2886 = vld [vmem:[#allocation11 + $0x8] sm:$0xf]
    %v2887 = vld [vmem:[#allocation11 + $0xc] sm:$0xf]
    %v2888 = vld [vmem:[#allocation11 + $0x10] sm:$0xf]
    %v2889 = vld [vmem:[#allocation11 + $0x14] sm:$0xf]
    %v2890 = vld [vmem:[#allocation11 + $0x18] sm:$0xf]
    %v2891 = vld [vmem:[#allocation11 + $0x1c] sm:$0xf]
    %v2892 = vld [vmem:[#allocation11 + $0x20] sm:$0xf]
    %v2893 = vld [vmem:[#allocation11 + $0x24] sm:$0xf]
    %v2894 = vld [vmem:[#allocation11 + $0x28] sm:$0xf]
    %v2895 = vld [vmem:[#allocation11 + $0x2c] sm:$0xf]
    %v2896 = vld [vmem:[#allocation11 + $0x30] sm:$0xf]
    %v2897 = vld [vmem:[#allocation11 + $0x34] sm:$0xf]
    %v2898 = vld [vmem:[#allocation11 + $0x38] sm:$0xf]
    %v2899 = vld [vmem:[#allocation11 + $0x3c] sm:$0xf]
    %v2900 = vld [vmem:[#allocation11 + $0x40] sm:$0xf]
    %v2901 = vld [vmem:[#allocation11 + $0x44] sm:$0xf]
    %v2902 = vld [vmem:[#allocation11 + $0x48] sm:$0xf]
    %v2903 = vld [vmem:[#allocation11 + $0x4c] sm:$0xf]
    %v2904 = vld [vmem:[#allocation11 + $0x50] sm:$0xf]
    %v2905 = vld [vmem:[#allocation11 + $0x54] sm:$0xf]
    %v2906 = vld [vmem:[#allocation11 + $0x58] sm:$0xf]
    %v2907 = vld [vmem:[#allocation11 + $0x5c] sm:$0xf]
    %v2908 = vld [vmem:[#allocation11 + $0x60] sm:$0xf]
    %v2909 = vld [vmem:[#allocation11 + $0x64] sm:$0xf]
    %v2910 = vld [vmem:[#allocation11 + $0x68] sm:$0xf]
    %v2911 = vld [vmem:[#allocation11 + $0x6c] sm:$0xf]
    %v2912 = vld [vmem:[#allocation11 + $0x70] sm:$0xf]
    %v2913 = vld [vmem:[#allocation11 + $0x74] sm:$0xf]
    %v2914 = vld [vmem:[#allocation11 + $0x78] sm:$0xf]
    %v2915 = vld [vmem:[#allocation11 + $0x7c] sm:$0xf]
    %v2916 = vld [vmem:[#allocation13] sm:$0x1]
    %v2918 = vlaneseq
    %v2919 = vshrl.u32 %v2918, 7
    %v2920 = vsub.s32 0, %v2919
    %v2921 = vrot.slane %v2916, %v2920
    %v2955 = vunpack.c.l.b16 %v2884
    %v2956 = vunpack.c.l.b16 %v2885
    %v2957 = vunpack.c.l.b16 %v2886
    %v2958 = vunpack.c.l.b16 %v2887
    %v2959 = vunpack.c.l.b16 %v2888
    %v2960 = vunpack.c.l.b16 %v2889
    %v2961 = vunpack.c.l.b16 %v2890
    %v2962 = vunpack.c.l.b16 %v2891
    %v2963 = vunpack.c.l.b16 %v2892
    %v2964 = vunpack.c.l.b16 %v2893
    %v2965 = vunpack.c.l.b16 %v2894
    %v2966 = vunpack.c.l.b16 %v2895
    %v2967 = vunpack.c.l.b16 %v2896
    %v2968 = vunpack.c.l.b16 %v2897
    %v2969 = vunpack.c.l.b16 %v2898
    %v2970 = vunpack.c.l.b16 %v2899
    %v2971 = vunpack.c.l.b16 %v2900
    %v2972 = vunpack.c.l.b16 %v2901
    %v2973 = vunpack.c.l.b16 %v2902
    %v2974 = vunpack.c.l.b16 %v2903
    %v2975 = vunpack.c.l.b16 %v2904
    %v2976 = vunpack.c.l.b16 %v2905
    %v2977 = vunpack.c.l.b16 %v2906
    %v2978 = vunpack.c.l.b16 %v2907
    %v2979 = vunpack.c.l.b16 %v2908
    %v2980 = vunpack.c.l.b16 %v2909
    %v2981 = vunpack.c.l.b16 %v2910
    %v2982 = vunpack.c.l.b16 %v2911
    %v2983 = vunpack.c.l.b16 %v2912
    %v2984 = vunpack.c.l.b16 %v2913
    %v2985 = vunpack.c.l.b16 %v2914
    %v2986 = vunpack.c.l.b16 %v2915
    %v2987 = vpack.c.b16 %v2956, %v2955
    %v2988 = vpack.c.b16 %v2958, %v2957
    %v2989 = vpack.c.b16 %v2960, %v2959
    %v2990 = vpack.c.b16 %v2962, %v2961
    %v2991 = vpack.c.b16 %v2964, %v2963
    %v2992 = vpack.c.b16 %v2966, %v2965
    %v2993 = vpack.c.b16 %v2968, %v2967
    %v2994 = vpack.c.b16 %v2970, %v2969
    %v2995 = vpack.c.b16 %v2972, %v2971
    %v2996 = vpack.c.b16 %v2974, %v2973
    %v2997 = vpack.c.b16 %v2976, %v2975
    %v2998 = vpack.c.b16 %v2978, %v2977
    %v2999 = vpack.c.b16 %v2980, %v2979
    %v3000 = vpack.c.b16 %v2982, %v2981
    %v3001 = vpack.c.b16 %v2984, %v2983
    %v3002 = vpack.c.b16 %v2986, %v2985
    %3019 = vmatprep.subr.bf16.mxu0 0
    %3020 = vmatpush1.bf16.msra.mxu0 %v2987
    %3021 = vmatprep.subr.bf16.mxu0 0
    %3022 = vmatpush1.bf16.msra.mxu0 %v2988
    %3023 = vmatprep.subr.bf16.mxu0 0
    %3024 = vmatpush1.bf16.msra.mxu0 %v2989
    %3025 = vmatprep.subr.bf16.mxu0 0
    %3026 = vmatpush1.bf16.msra.mxu0 %v2990
    %3027 = vmatprep.subr.bf16.mxu0 0
    %3028 = vmatpush1.bf16.msra.mxu0 %v2991
    %3029 = vmatprep.subr.bf16.mxu0 0
    %3030 = vmatpush1.bf16.msra.mxu0 %v2992
    %3031 = vmatprep.subr.bf16.mxu0 0
    %3032 = vmatpush1.bf16.msra.mxu0 %v2993
    %3033 = vmatprep.subr.bf16.mxu0 0
    %3034 = vmatpush1.bf16.msra.mxu0 %v2994
    %3035 = vmatprep.subr.bf16.mxu0 0
    %3036 = vmatpush1.bf16.msra.mxu0 %v2995
    %3037 = vmatprep.subr.bf16.mxu0 0
    %3038 = vmatpush1.bf16.msra.mxu0 %v2996
    %3039 = vmatprep.subr.bf16.mxu0 0
    %3040 = vmatpush1.bf16.msra.mxu0 %v2997
    %3041 = vmatprep.subr.bf16.mxu0 0
    %3042 = vmatpush1.bf16.msra.mxu0 %v2998
    %3043 = vmatprep.subr.bf16.mxu0 0
    %3044 = vmatpush1.bf16.msra.mxu0 %v2999
    %3045 = vmatprep.subr.bf16.mxu0 0
    %3046 = vmatpush1.bf16.msra.mxu0 %v3000
    %3047 = vmatprep.subr.bf16.mxu0 0
    %3048 = vmatpush1.bf16.msra.mxu0 %v3001
    %3049 = vmatprep.subr.bf16.mxu0 0
    %3050 = vmatpush1.bf16.msra.mxu0 %v3002
    %3051 = vmatprep.mubr.bf16.mxu0 %v2883
    %3052 = vmatmul.mubr.bf16.gmra.mrb[0].mxu0 %v2882
    %v3053 = vpop.f32.mrb[0].mxu0
    %v3054 = vadd.f32 %v2921, %v3053
    %v3055 = vpop.f32.mrb[0].mxu0
    %v3056 = vpop.f32.mrb[0].mxu0
    %v3057 = vadd.f32 %v2921, %v3056
    %v3058 = vpop.f32.mrb[0].mxu0
    %3059 = vdwg.mxu0
    %v3060 = vmax.f32 %v3054, 0.0
    %v3061 = vmax.f32 %v3057, 0.0
    %v3062 = vpack.c.bf16 %v3061, %v3060
    %v3063 = vld [vmem:[#allocation14] sm:$0xf]
    %v3064 = vld [vmem:[#allocation14 + $0x4] sm:$0xf]
    %v3065 = vld [vmem:[#allocation14 + $0x8] sm:$0xf]
    %v3066 = vld [vmem:[#allocation14 + $0xc] sm:$0xf]
    %v3067 = vld [vmem:[#allocation14 + $0x10] sm:$0xf]
    %v3068 = vld [vmem:[#allocation14 + $0x14] sm:$0xf]
    %v3069 = vld [vmem:[#allocation14 + $0x18] sm:$0xf]
    %v3070 = vld [vmem:[#allocation14 + $0x1c] sm:$0xf]
    %v3071 = vld [vmem:[#allocation14 + $0x20] sm:$0xf]
    %v3072 = vld [vmem:[#allocation14 + $0x24] sm:$0xf]
    %v3073 = vld [vmem:[#allocation14 + $0x28] sm:$0xf]
    %v3074 = vld [vmem:[#allocation14 + $0x2c] sm:$0xf]
    %v3075 = vld [vmem:[#allocation14 + $0x30] sm:$0xf]
    %v3076 = vld [vmem:[#allocation14 + $0x34] sm:$0xf]
    %v3077 = vld [vmem:[#allocation14 + $0x38] sm:$0xf]
    %v3078 = vld [vmem:[#allocation14 + $0x3c] sm:$0xf]
    %v3079 = vld [vmem:[#allocation16] sm:$0x1]
    %v3081 = vlaneseq
    %v3082 = vshrl.u32 %v3081, 7
    %v3083 = vsub.s32 0, %v3082
    %v3084 = vrot.slane %v3079, %v3083
    %v3102 = vunpack.c.l.b16 %v3063
    %v3103 = vunpack.c.l.b16 %v3064
    %v3104 = vunpack.c.l.b16 %v3065
    %v3105 = vunpack.c.l.b16 %v3066
    %v3106 = vunpack.c.l.b16 %v3067
    %v3107 = vunpack.c.l.b16 %v3068
    %v3108 = vunpack.c.l.b16 %v3069
    %v3109 = vunpack.c.l.b16 %v3070
    %v3110 = vunpack.c.l.b16 %v3071
    %v3111 = vunpack.c.l.b16 %v3072
    %v3112 = vunpack.c.l.b16 %v3073
    %v3113 = vunpack.c.l.b16 %v3074
    %v3114 = vunpack.c.l.b16 %v3075
    %v3115 = vunpack.c.l.b16 %v3076
    %v3116 = vunpack.c.l.b16 %v3077
    %v3117 = vunpack.c.l.b16 %v3078
    %v3118 = vpack.c.b16 %v3103, %v3102
    %v3119 = vpack.c.b16 %v3105, %v3104
    %v3120 = vpack.c.b16 %v3107, %v3106
    %v3121 = vpack.c.b16 %v3109, %v3108
    %v3122 = vpack.c.b16 %v3111, %v3110
    %v3123 = vpack.c.b16 %v3113, %v3112
    %v3124 = vpack.c.b16 %v3115, %v3114
    %v3125 = vpack.c.b16 %v3117, %v3116
    %3134 = vmatprep.subr.bf16.mxu0 0
    %3135 = vmatpush1.bf16.msra.mxu0 %v3118
    %3136 = vmatprep.subr.bf16.mxu0 0
    %3137 = vmatpush1.bf16.msra.mxu0 %v3119
    %3138 = vmatprep.subr.bf16.mxu0 0
    %3139 = vmatpush1.bf16.msra.mxu0 %v3120
    %3140 = vmatprep.subr.bf16.mxu0 0
    %3141 = vmatpush1.bf16.msra.mxu0 %v3121
    %3142 = vmatprep.subr.bf16.mxu0 0
    %3143 = vmatpush1.bf16.msra.mxu0 %v3122
    %3144 = vmatprep.subr.bf16.mxu0 0
    %3145 = vmatpush1.bf16.msra.mxu0 %v3123
    %3146 = vmatprep.subr.bf16.mxu0 0
    %3147 = vmatpush1.bf16.msra.mxu0 %v3124
    %3148 = vmatprep.subr.bf16.mxu0 0
    %3149 = vmatpush1.bf16.msra.mxu0 %v3125
    %3150 = vmatprep.subr.bf16.mxu0 0
    %3151 = vmatpush1.bf16.msra.mxu0 0
    %3152 = vmatprep.subr.bf16.mxu0 0
    %3153 = vmatpush1.bf16.msra.mxu0 0
    %3154 = vmatprep.subr.bf16.mxu0 0
    %3155 = vmatpush1.bf16.msra.mxu0 0
    %3156 = vmatprep.subr.bf16.mxu0 0
    %3157 = vmatpush1.bf16.msra.mxu0 0
    %3158 = vmatprep.subr.bf16.mxu0 0
    %3159 = vmatpush1.bf16.msra.mxu0 0
    %3160 = vmatprep.subr.bf16.mxu0 0
    %3161 = vmatpush1.bf16.msra.mxu0 0
    %3162 = vmatprep.subr.bf16.mxu0 0
    %3163 = vmatpush1.bf16.msra.mxu0 0
    %3164 = vmatprep.subr.bf16.mxu0 0
    %3165 = vmatpush1.bf16.msra.mxu0 0
    %3166 = vmatprep.mubr.bf16.mxu0 0
    %3167 = vmatmul.mubr.bf16.gmra.mrb[0].mxu0 %v3062
    %v3168 = vpop.f32.mrb[0].mxu0
    %v3169 = vadd.f32 %v3084, %v3168
    %v3170 = vpop.f32.mrb[0].mxu0
    %v3171 = vpop.f32.mrb[0].mxu0
    %v3172 = vadd.f32 %v3084, %v3171
    %v3173 = vpop.f32.mrb[0].mxu0
    %3174 = vdwg.mxu0
    %3175 = vst [vmem:[#allocation17] sm:$0xff] %v3169
    %3176 = vst [vmem:[#allocation17 + $0x8] sm:$0xff] %v3172
    // Predicated region
    $region74: #{tpu_custom_call.1} parent=1 // pred_check
      _
    $region75: #{tpu_custom_call.1} parent=1 // pred_check_branch
      %3178 = sbr.rel (0) target = $region77
    $region76: #{tpu_custom_call.1} parent=1 // pred_region
      %s3180 = ssub.s32 256, 256
      %3181 = vsyncadd [#allocation4], %s3180
      %s3182 = sshll.u32 [#allocation17], 4
      %s3183 = int_to_ptr.vmem [resolvable:$true] %s3182
      %3188 = dma.vmem_to_hbm [thread:$0]  %s3183, 256, %s9, [#allocation4], 128, 128, 8
    $region77: #{tpu_custom_call.1} parent=1 // pred_fallthru
      _
    // Predicated region
    $region78: #{tpu_custom_call.1} parent=1 // pred_check
      _
    $region79: #{tpu_custom_call.1} parent=1 // pred_check_branch
      %3190 = sbr.rel (0) target = $region81
    $region80: #{tpu_custom_call.1} parent=1 // pred_region
      %3191 = dma.done [#allocation4], 256
    $region81: #{tpu_custom_call.1} parent=1 // pred_fallthru
      _
    %3192 = vsyncpa [#allocation3], 1
    %3193 = vsyncpa [#allocation6], 1
    %3194 = vsyncpa [#allocation9], 1
    %3195 = vsyncpa [#allocation12], 1
    %3196 = vsyncpa [#allocation15], 1
    %3197 = vsyncpa [#allocation4], 1

</llo_original>
